<compile_context>
chip_gen: v7x
topology: tpu7x:2x2x1
jax: 0.10.0
libtpu: 0.0.40
codegen_flags: <defaults>
</compile_context>

<pallas_src>
import functools

import jax
import jax.numpy as jnp
from jax.experimental import pallas as pl
from jax.experimental.pallas import tpu as pltpu


def _knn_dist_kernel(qa_ref, va_ref, f_ref, p_ref, o_ref, *, k):
    qa = qa_ref[0]                       # [TM, 4]  = [-2*q, 1]   (query row tile)
    va = va_ref[0]                       # [N, 4]   = [v, ||v||^2]
    tm = qa.shape[0]
    n = va.shape[0]
    verts = va[:, 0:3]                   # [N, 3]  offset-0 lane slice (tiny, once per step)

    # Squared distance up to a per-row constant (argmin-equivalent):
    #   work[m, j] = ||v_j||^2 - 2 <q_m, v_j>  ( == ||q_m - v_j||^2 - ||q_m||^2 )
    work = jax.lax.dot_general(
        qa, va, (((1,), (1,)), ((), ())),
        preferred_element_type=jnp.float32)                       # [TM, N]

    col = jax.lax.broadcasted_iota(jnp.int32, (1, n), 1)          # [1, N] broadcast iota
    big = jnp.float32(3.0e38)

    # Packed MLP params (layer-1 [v0, v, v0-v, nrm] concat already folded
    # algebraically in the wrapper).
    ap    = p_ref[0:3, :]        # A' = W1[v0 rows] + W1[(v0-v) rows]   [3, 10]
    bp    = p_ref[3:6, :]        # B' = W1[v rows]  - W1[(v0-v) rows]   [3, 10]
    c_row = p_ref[6:7, :]        # W1 row for the norm feature          [1, 10]
    b1    = p_ref[7:8, :]        # [1, 10]
    w2    = p_ref[8:18, :]       # [10, 10]
    b2    = p_ref[18:19, :]      # [1, 10]
    w3r   = p_ref[19:20, :]      # W3^T                                 [1, 10]
    b3    = p_ref[20:21, 0:1]    # [1, 1]

    s_mat = jnp.zeros((tm, n), jnp.float32)   # combined per-neighbor weight matrix
    v0 = None
    h0 = None

    # k is tiny & static -> Python unroll.  Each step: 2 lane reductions, one
    # narrow [TM,N]@[N,3] vertex gather, a tiny per-neighbor MLP and a select
    # into s_mat.  The wide feature operand is NOT touched inside the loop.
    for j in range(k):
        mn = jnp.min(work, axis=1, keepdims=True)                           # value min
        eq = work <= mn
        sel = jnp.min(jnp.where(eq, col, n), axis=1, keepdims=True)         # lowest-index tie-break
        hot = col == sel                                                    # single-hot [TM, N]
        work = jnp.where(hot, big, work)                                    # mask for next round

        vj = jnp.dot(hot.astype(jnp.float32), verts,
                     preferred_element_type=jnp.float32)                    # [TM, 3]
        if j == 0:
            v0 = vj                                                         # nearest == self
            h0 = jnp.dot(v0, ap, preferred_element_type=jnp.float32) + b1   # loop-invariant [TM, 10]
        d = v0 - vj
        nrm = jnp.sqrt(jnp.sum(d * d, axis=1, keepdims=True))               # [TM, 1]

        # 3-layer MLP on the folded 10-d geometric feature
        h = h0 + jnp.dot(vj, bp, preferred_element_type=jnp.float32) + nrm * c_row
        h = jnp.where(h > 0, h, 0.2 * h)                                    # LeakyReLU(0.2)
        h = jnp.dot(h, w2, preferred_element_type=jnp.float32) + b2
        h = jnp.where(h > 0, h, 0.2 * h)
        wgt = jnp.sum(h * w3r, axis=1, keepdims=True) + b3                  # [TM, 1]

        s_mat = jnp.where(hot, wgt, s_mat)                                  # scatter weight into column sel

    # ONE wide gather matmul:  out = sum_j wgt_j * F[sel_j]  ==  S @ F_pad
    ft = f_ref[0]                                                           # [N, C_pad] lane-dense
    o_ref[0] = jnp.dot(s_mat.astype(ft.dtype), ft,
                       preferred_element_type=jnp.float32).astype(o_ref.dtype)


def _vmem_capacity_bytes():
    try:
        return int(pltpu.get_tpu_info().vmem_capacity_bytes)
    except Exception:
        return 128 * 1024 * 1024


def _pick_tile(n, cap):
    """Largest row tile <= cap that divides N and is a multiple of 8."""
    if n <= cap or n % 8 != 0:
        return n
    for tm in range(cap, 0, -8):
        if n % tm == 0:
            return tm
    return n


def knn_dist(f_feat, vertices, params, k, *, tile_m=None, feat_dtype=jnp.float32):
    """JAX/Pallas equivalent of KNN_dist(k).forward(F, vertices).

    params = (W1, b1, W2, b2, W3, b3), W stored input-major (y = x @ W + b).
    feat_dtype=jnp.bfloat16 halves the dominant (feature) operand's VMEM/HBM
    traffic on v6e/v7x; selection + MLP stay f32 either way.
    """
    B, N, C = f_feat.shape
    assert vertices.shape == (B, N, 3)
    assert k <= N
    w1, b1, w2, b2, w3, b3 = params

    # Fold the [v0, v, v0-v, nrm] concat of layer 1 (exact algebra) and pack
    # ALL the tiny MLP params into one lane-padded operand -> one DMA stream.
    ap = w1[0:3, :] + w1[6:9, :]
    bp = w1[3:6, :] - w1[6:9, :]
    c_row = w1[9:10, :]
    packed = jnp.concatenate(
        [ap, bp, c_row,
         b1.reshape(1, 10), w2, b2.reshape(1, 10),
         w3.reshape(1, 10),                                   # W3^T
         jnp.pad(b3.reshape(1, 1), ((0, 0), (0, 9)))],        # b3 padded to width 10
        axis=0).astype(jnp.float32)                           # [21, 10]

    v = vertices.astype(jnp.float32)
    sq = jnp.sum(v * v, axis=-1, keepdims=True)               # [B, N, 1]
    verts_aug = jnp.concatenate([v, sq], axis=-1)             # [B, N, 4]  dist + gather source
    q_aug = jnp.concatenate([-2.0 * v, jnp.ones_like(sq)], axis=-1)   # [B, N, 4]  row-tiled query

    # Lane-dense feature operand & output: pad C up to a multiple of 128.
    c_pad = ((C + 127) // 128) * 128
    feats = f_feat.astype(feat_dtype)
    if c_pad != C:
        feats = jnp.pad(feats, ((0, 0), (0, 0), (0, c_pad - C)))

    # Generation-aware tiling: v7x has 64 MiB VMEM/TC, v5e/v6e have 128 MiB.
    vmem_cap = _vmem_capacity_bytes()
    small_vmem = vmem_cap <= 64 * 1024 * 1024
    tm_cap = 128 if small_vmem else 512
    vmem_limit = (40 if small_vmem else 64) * 1024 * 1024
    tm = tile_m if tile_m is not None else _pick_tile(N, tm_cap)
    assert N % tm == 0 and (tm % 8 == 0 or tm == N)
    # TODO(synk): for very large N, add a third "arbitrary" candidate-chunk grid
    # axis with a streaming running-top-k so F never needs to be fully resident.

    kernel = functools.partial(_knn_dist_kernel, k=k)
    out = pl.pallas_call(
        kernel,
        out_shape=jax.ShapeDtypeStruct((B, N, c_pad), jnp.float32),
        grid=(B, N // tm),
        in_specs=[
            pl.BlockSpec((1, tm, 4), lambda b, i: (b, i, 0)),       # q_aug row tile
            pl.BlockSpec((1, N, 4), lambda b, i: (b, 0, 0)),        # verts_aug (full N)
            pl.BlockSpec((1, N, c_pad), lambda b, i: (b, 0, 0)),    # features (full N, lane-dense)
            pl.BlockSpec((21, 10), lambda b, i: (0, 0)),            # packed MLP params
        ],
        out_specs=pl.BlockSpec((1, tm, c_pad), lambda b, i: (b, i, 0)),
        compiler_params=pltpu.CompilerParams(
            dimension_semantics=("parallel", "parallel"),
            vmem_limit_bytes=vmem_limit),
    )(q_aug, verts_aug, feats, packed)
    return out[..., :C] if c_pad != C else out


def knn_dist_ref(f_feat, vertices, params, k):
    """Pure-JAX reference mirroring the PyTorch module (for validation)."""
    w1, b1, w2, b2, w3, b3 = params
    hp = jax.lax.Precision.HIGHEST
    sq = jnp.sum(vertices * vertices, axis=-1)                              # [B, N]
    cross = jnp.einsum('bnc,bmc->bnm', vertices, vertices, precision=hp)
    dist = sq[:, :, None] + sq[:, None, :] - 2.0 * cross                    # symmetric
    idx = jax.lax.top_k(-dist, k)[1]                                        # [B, N, k]
    g_f = jax.vmap(lambda p, i: p[i])(f_feat, idx)                          # [B, N, k, C]
    g_v = jax.vmap(lambda p, i: p[i])(vertices, idx)                        # [B, N, k, 3]
    v0 = jnp.repeat(g_v[:, :, 0:1, :], k, axis=2)
    diff = v0 - g_v
    nrm = jnp.sqrt(jnp.sum(diff * diff, axis=-1, keepdims=True))
    v_f = jnp.concatenate([v0, g_v, diff, nrm], axis=-1)                    # [B, N, k, 10]
    h = jnp.dot(v_f, w1, precision=hp) + b1
    h = jnp.where(h > 0, h, 0.2 * h)
    h = jnp.dot(h, w2, precision=hp) + b2
    h = jnp.where(h > 0, h, 0.2 * h)
    wgt = jnp.dot(h, w3, precision=hp) + b3
    return jnp.sum(wgt * g_f, axis=-2)


if __name__ == "__main__":
    B, N, C, K = 2, 16, 8, 4

    key = jax.random.PRNGKey(0)
    ks = jax.random.split(key, 8)
    vertices = jax.random.normal(ks[0], (B, N, 3), jnp.float32)
    f_feat = jax.random.normal(ks[1], (B, N, C), jnp.float32)

    # Deterministic nn.Linear-style init (uniform +/- 1/sqrt(fan_in)), input-major.
    def lin_init(kw, kb, fan_in, fan_out):
        bound = float(1.0 / (fan_in ** 0.5))
        w = jax.random.uniform(kw, (fan_in, fan_out), jnp.float32, -bound, bound)
        b = jax.random.uniform(kb, (1, fan_out), jnp.float32, -bound, bound)
        return w, b

    w1, b1 = lin_init(ks[2], ks[3], 10, 10)
    w2, b2 = lin_init(ks[4], ks[5], 10, 10)
    w3, b3 = lin_init(ks[6], ks[7], 10, 1)
    params = (w1, b1, w2, b2, w3, b3)

    out = knn_dist(f_feat, vertices, params, K)
    out = jax.block_until_ready(out)
    assert out.shape == (B, N, C) and out.dtype == jnp.float32

    ref = jax.block_until_ready(knn_dist_ref(f_feat, vertices, params, K))
    err = float(jnp.max(jnp.abs(out - ref)))
    assert err < 1e-2, f"max abs error vs reference: {err}"
    print("KERNEL_OK")
</pallas_src>

<mosaic_0001>
module attributes {stable_mosaic.version = 11 : i64} {
  func.func @_knn_dist_kernel(%arg0: i32, %arg1: i32, %arg2: memref<1x16x4xf32, #tpu.memory_space<vmem>>, %arg3: memref<1x16x4xf32, #tpu.memory_space<vmem>>, %arg4: memref<1x16x128xf32, #tpu.memory_space<vmem>>, %arg5: memref<21x10xf32, #tpu.memory_space<vmem>>, %arg6: memref<1x16x128xf32, #tpu.memory_space<vmem>>) attributes {dimension_semantics = [#tpu.dimension_semantics<parallel>, #tpu.dimension_semantics<parallel>], iteration_bounds = array<i64: 2, 1>, scalar_prefetch = 0 : i64, scratch_operands = 0 : i64, tpu.core_type = #tpu.core_type<tc>, window_params = [{transform_indices = @transform_0, window_bounds = array<i64: 1, 16, 4>}, {transform_indices = @transform_1, window_bounds = array<i64: 1, 16, 4>}, {transform_indices = @transform_2, window_bounds = array<i64: 1, 16, 128>}, {pipeline_mode = #tpu.pipeline_mode<synchronous>, transform_indices = @transform_3, window_bounds = array<i64: 21, 10>}, {transform_indices = @transform_4, window_bounds = array<i64: 1, 16, 128>}]} {
    %c0 = arith.constant 0 : index
    %c0_0 = arith.constant 0 : index
    %c0_1 = arith.constant 0 : index
    %0 = vector.load %arg2[%c0, %c0_0, %c0_1] : memref<1x16x4xf32, #tpu.memory_space<vmem>>, vector<1x16x4xf32>
    %1 = vector.shape_cast %0 : vector<1x16x4xf32> to vector<16x4xf32>
    %c0_2 = arith.constant 0 : index
    %c0_3 = arith.constant 0 : index
    %c0_4 = arith.constant 0 : index
    %2 = vector.load %arg3[%c0_2, %c0_3, %c0_4] : memref<1x16x4xf32, #tpu.memory_space<vmem>>, vector<1x16x4xf32>
    %3 = vector.shape_cast %2 : vector<1x16x4xf32> to vector<16x4xf32>
    %4 = vector.extract_strided_slice %3 {offsets = [0, 0], sizes = [16, 3], strides = [1, 1]} : vector<16x4xf32> to vector<16x3xf32>
    %cst = arith.constant dense<0.000000e+00> : vector<16x16xf32>
    %5 = tpu.matmul %1, %3, %cst {dimension_numbers = #tpu.dot_dimension_numbers<[1], [1], [0], [0], [0, 0, 1, 0], [], []>} : vector<16x4xf32>, vector<16x4xf32>, vector<16x16xf32> -> vector<16x16xf32>
    %6 = tpu.iota {dimensions = array<i32: 1>} : vector<1x16xi32>
    %c0_5 = arith.constant 0 : index
    %c0_6 = arith.constant 0 : index
    %7 = vector.load %arg5[%c0_5, %c0_6] : memref<21x10xf32, #tpu.memory_space<vmem>>, vector<3x10xf32>
    %c3 = arith.constant 3 : index
    %c0_7 = arith.constant 0 : index
    %8 = vector.load %arg5[%c3, %c0_7] : memref<21x10xf32, #tpu.memory_space<vmem>>, vector<3x10xf32>
    %c6 = arith.constant 6 : index
    %c0_8 = arith.constant 0 : index
    %9 = vector.load %arg5[%c6, %c0_8] : memref<21x10xf32, #tpu.memory_space<vmem>>, vector<1x10xf32>
    %c7 = arith.constant 7 : index
    %c0_9 = arith.constant 0 : index
    %10 = vector.load %arg5[%c7, %c0_9] : memref<21x10xf32, #tpu.memory_space<vmem>>, vector<1x10xf32>
    %c8 = arith.constant 8 : index
    %c0_10 = arith.constant 0 : index
    %11 = vector.load %arg5[%c8, %c0_10] : memref<21x10xf32, #tpu.memory_space<vmem>>, vector<10x10xf32>
    %c18 = arith.constant 18 : index
    %c0_11 = arith.constant 0 : index
    %12 = vector.load %arg5[%c18, %c0_11] : memref<21x10xf32, #tpu.memory_space<vmem>>, vector<1x10xf32>
    %c19 = arith.constant 19 : index
    %c0_12 = arith.constant 0 : index
    %13 = vector.load %arg5[%c19, %c0_12] : memref<21x10xf32, #tpu.memory_space<vmem>>, vector<1x10xf32>
    %c20 = arith.constant 20 : index
    %c0_13 = arith.constant 0 : index
    %14 = vector.load %arg5[%c20, %c0_13] : memref<21x10xf32, #tpu.memory_space<vmem>>, vector<1x1xf32>
    %cst_14 = arith.constant 0.000000e+00 : f32
    %15 = vector.broadcast %cst_14 : f32 to vector<16x16xf32>
    %cst_15 = arith.constant dense<0x7F800000> : vector<16xf32>
    %16 = vector.multi_reduction <minimumf>, %5, %cst_15 [1] : vector<16x16xf32> to vector<16xf32>
    %17 = vector.shape_cast %16 : vector<16xf32> to vector<16x1xf32>
    %18 = vector.broadcast %17 : vector<16x1xf32> to vector<16x16xf32>
    %19 = arith.cmpf ole, %5, %18 : vector<16x16xf32>
    %c16_i32 = arith.constant 16 : i32
    %20 = vector.shape_cast %6 : vector<1x16xi32> to vector<1x16xi32>
    %21 = vector.broadcast %20 : vector<1x16xi32> to vector<16x16xi32>
    %22 = vector.broadcast %c16_i32 : i32 to vector<16x16xi32>
    %23 = arith.select %19, %21, %22 : vector<16x16xi1>, vector<16x16xi32>
    %cst_16 = arith.constant dense<2147483647> : vector<16xi32>
    %24 = vector.multi_reduction <minsi>, %23, %cst_16 [1] : vector<16x16xi32> to vector<16xi32>
    %25 = vector.shape_cast %24 : vector<16xi32> to vector<16x1xi32>
    %26 = vector.broadcast %6 : vector<1x16xi32> to vector<16x16xi32>
    %27 = vector.broadcast %25 : vector<16x1xi32> to vector<16x16xi32>
    %28 = arith.cmpi eq, %26, %27 : vector<16x16xi32>
    %cst_17 = arith.constant 3.000000e+38 : f32
    %29 = vector.broadcast %cst_17 : f32 to vector<16x16xf32>
    %30 = arith.select %28, %29, %5 : vector<16x16xi1>, vector<16x16xf32>
    %31 = arith.extui %28 : vector<16x16xi1> to vector<16x16xi32>
    %32 = arith.sitofp %31 : vector<16x16xi32> to vector<16x16xf32>
    %cst_18 = arith.constant dense<0.000000e+00> : vector<16x3xf32>
    %33 = tpu.matmul %32, %4, %cst_18 {dimension_numbers = #tpu.dot_dimension_numbers<[1], [0], [0], [1], [0, 0, 1, 1], [], []>} : vector<16x16xf32>, vector<16x3xf32>, vector<16x3xf32> -> vector<16x3xf32>
    %cst_19 = arith.constant dense<0.000000e+00> : vector<16x10xf32>
    %34 = tpu.matmul %33, %7, %cst_19 {dimension_numbers = #tpu.dot_dimension_numbers<[1], [0], [0], [1], [0, 0, 1, 1], [], []>} : vector<16x3xf32>, vector<3x10xf32>, vector<16x10xf32> -> vector<16x10xf32>
    %35 = vector.broadcast %10 : vector<1x10xf32> to vector<16x10xf32>
    %36 = arith.addf %34, %35 : vector<16x10xf32>
    %37 = arith.subf %33, %33 : vector<16x3xf32>
    %38 = arith.mulf %37, %37 : vector<16x3xf32>
    %cst_20 = arith.constant dense<0.000000e+00> : vector<16xf32>
    %39 = vector.multi_reduction <add>, %38, %cst_20 [1] : vector<16x3xf32> to vector<16xf32>
    %40 = vector.shape_cast %39 : vector<16xf32> to vector<16x1xf32>
    %41 = math.sqrt %40 : vector<16x1xf32>
    %cst_21 = arith.constant dense<0.000000e+00> : vector<16x10xf32>
    %42 = tpu.matmul %33, %8, %cst_21 {dimension_numbers = #tpu.dot_dimension_numbers<[1], [0], [0], [1], [0, 0, 1, 1], [], []>} : vector<16x3xf32>, vector<3x10xf32>, vector<16x10xf32> -> vector<16x10xf32>
    %43 = arith.addf %36, %42 : vector<16x10xf32>
    %44 = vector.broadcast %41 : vector<16x1xf32> to vector<16x10xf32>
    %45 = vector.broadcast %9 : vector<1x10xf32> to vector<16x10xf32>
    %46 = arith.mulf %44, %45 : vector<16x10xf32>
    %47 = arith.addf %43, %46 : vector<16x10xf32>
    %cst_22 = arith.constant 0.000000e+00 : f32
    %48 = vector.broadcast %cst_22 : f32 to vector<16x10xf32>
    %49 = arith.cmpf ogt, %47, %48 : vector<16x10xf32>
    %cst_23 = arith.constant 2.000000e-01 : f32
    %50 = vector.broadcast %cst_23 : f32 to vector<16x10xf32>
    %51 = arith.mulf %50, %47 : vector<16x10xf32>
    %52 = arith.select %49, %47, %51 : vector<16x10xi1>, vector<16x10xf32>
    %cst_24 = arith.constant dense<0.000000e+00> : vector<16x10xf32>
    %53 = tpu.matmul %52, %11, %cst_24 {dimension_numbers = #tpu.dot_dimension_numbers<[1], [0], [0], [1], [0, 0, 1, 1], [], []>} : vector<16x10xf32>, vector<10x10xf32>, vector<16x10xf32> -> vector<16x10xf32>
    %54 = vector.broadcast %12 : vector<1x10xf32> to vector<16x10xf32>
    %55 = arith.addf %53, %54 : vector<16x10xf32>
    %cst_25 = arith.constant 0.000000e+00 : f32
    %56 = vector.broadcast %cst_25 : f32 to vector<16x10xf32>
    %57 = arith.cmpf ogt, %55, %56 : vector<16x10xf32>
    %cst_26 = arith.constant 2.000000e-01 : f32
    %58 = vector.broadcast %cst_26 : f32 to vector<16x10xf32>
    %59 = arith.mulf %58, %55 : vector<16x10xf32>
    %60 = arith.select %57, %55, %59 : vector<16x10xi1>, vector<16x10xf32>
    %61 = vector.broadcast %13 : vector<1x10xf32> to vector<16x10xf32>
    %62 = arith.mulf %60, %61 : vector<16x10xf32>
    %cst_27 = arith.constant dense<0.000000e+00> : vector<16xf32>
    %63 = vector.multi_reduction <add>, %62, %cst_27 [1] : vector<16x10xf32> to vector<16xf32>
    %64 = vector.shape_cast %63 : vector<16xf32> to vector<16x1xf32>
    %65 = vector.broadcast %14 : vector<1x1xf32> to vector<16x1xf32>
    %66 = arith.addf %64, %65 : vector<16x1xf32>
    %67 = vector.shape_cast %66 : vector<16x1xf32> to vector<16x1xf32>
    %68 = vector.broadcast %67 : vector<16x1xf32> to vector<16x16xf32>
    %69 = arith.select %28, %68, %15 : vector<16x16xi1>, vector<16x16xf32>
    %cst_28 = arith.constant dense<0x7F800000> : vector<16xf32>
    %70 = vector.multi_reduction <minimumf>, %30, %cst_28 [1] : vector<16x16xf32> to vector<16xf32>
    %71 = vector.shape_cast %70 : vector<16xf32> to vector<16x1xf32>
    %72 = vector.broadcast %71 : vector<16x1xf32> to vector<16x16xf32>
    %73 = arith.cmpf ole, %30, %72 : vector<16x16xf32>
    %c16_i32_29 = arith.constant 16 : i32
    %74 = vector.shape_cast %6 : vector<1x16xi32> to vector<1x16xi32>
    %75 = vector.broadcast %74 : vector<1x16xi32> to vector<16x16xi32>
    %76 = vector.broadcast %c16_i32_29 : i32 to vector<16x16xi32>
    %77 = arith.select %73, %75, %76 : vector<16x16xi1>, vector<16x16xi32>
    %cst_30 = arith.constant dense<2147483647> : vector<16xi32>
    %78 = vector.multi_reduction <minsi>, %77, %cst_30 [1] : vector<16x16xi32> to vector<16xi32>
    %79 = vector.shape_cast %78 : vector<16xi32> to vector<16x1xi32>
    %80 = vector.broadcast %6 : vector<1x16xi32> to vector<16x16xi32>
    %81 = vector.broadcast %79 : vector<16x1xi32> to vector<16x16xi32>
    %82 = arith.cmpi eq, %80, %81 : vector<16x16xi32>
    %cst_31 = arith.constant 3.000000e+38 : f32
    %83 = vector.broadcast %cst_31 : f32 to vector<16x16xf32>
    %84 = arith.select %82, %83, %30 : vector<16x16xi1>, vector<16x16xf32>
    %85 = arith.extui %82 : vector<16x16xi1> to vector<16x16xi32>
    %86 = arith.sitofp %85 : vector<16x16xi32> to vector<16x16xf32>
    %cst_32 = arith.constant dense<0.000000e+00> : vector<16x3xf32>
    %87 = tpu.matmul %86, %4, %cst_32 {dimension_numbers = #tpu.dot_dimension_numbers<[1], [0], [0], [1], [0, 0, 1, 1], [], []>} : vector<16x16xf32>, vector<16x3xf32>, vector<16x3xf32> -> vector<16x3xf32>
    %88 = arith.subf %33, %87 : vector<16x3xf32>
    %89 = arith.mulf %88, %88 : vector<16x3xf32>
    %cst_33 = arith.constant dense<0.000000e+00> : vector<16xf32>
    %90 = vector.multi_reduction <add>, %89, %cst_33 [1] : vector<16x3xf32> to vector<16xf32>
    %91 = vector.shape_cast %90 : vector<16xf32> to vector<16x1xf32>
    %92 = math.sqrt %91 : vector<16x1xf32>
    %cst_34 = arith.constant dense<0.000000e+00> : vector<16x10xf32>
    %93 = tpu.matmul %87, %8, %cst_34 {dimension_numbers = #tpu.dot_dimension_numbers<[1], [0], [0], [1], [0, 0, 1, 1], [], []>} : vector<16x3xf32>, vector<3x10xf32>, vector<16x10xf32> -> vector<16x10xf32>
    %94 = arith.addf %36, %93 : vector<16x10xf32>
    %95 = vector.broadcast %92 : vector<16x1xf32> to vector<16x10xf32>
    %96 = vector.broadcast %9 : vector<1x10xf32> to vector<16x10xf32>
    %97 = arith.mulf %95, %96 : vector<16x10xf32>
    %98 = arith.addf %94, %97 : vector<16x10xf32>
    %cst_35 = arith.constant 0.000000e+00 : f32
    %99 = vector.broadcast %cst_35 : f32 to vector<16x10xf32>
    %100 = arith.cmpf ogt, %98, %99 : vector<16x10xf32>
    %cst_36 = arith.constant 2.000000e-01 : f32
    %101 = vector.broadcast %cst_36 : f32 to vector<16x10xf32>
    %102 = arith.mulf %101, %98 : vector<16x10xf32>
    %103 = arith.select %100, %98, %102 : vector<16x10xi1>, vector<16x10xf32>
    %cst_37 = arith.constant dense<0.000000e+00> : vector<16x10xf32>
    %104 = tpu.matmul %103, %11, %cst_37 {dimension_numbers = #tpu.dot_dimension_numbers<[1], [0], [0], [1], [0, 0, 1, 1], [], []>} : vector<16x10xf32>, vector<10x10xf32>, vector<16x10xf32> -> vector<16x10xf32>
    %105 = vector.broadcast %12 : vector<1x10xf32> to vector<16x10xf32>
    %106 = arith.addf %104, %105 : vector<16x10xf32>
    %cst_38 = arith.constant 0.000000e+00 : f32
    %107 = vector.broadcast %cst_38 : f32 to vector<16x10xf32>
    %108 = arith.cmpf ogt, %106, %107 : vector<16x10xf32>
    %cst_39 = arith.constant 2.000000e-01 : f32
    %109 = vector.broadcast %cst_39 : f32 to vector<16x10xf32>
    %110 = arith.mulf %109, %106 : vector<16x10xf32>
    %111 = arith.select %108, %106, %110 : vector<16x10xi1>, vector<16x10xf32>
    %112 = vector.broadcast %13 : vector<1x10xf32> to vector<16x10xf32>
    %113 = arith.mulf %111, %112 : vector<16x10xf32>
    %cst_40 = arith.constant dense<0.000000e+00> : vector<16xf32>
    %114 = vector.multi_reduction <add>, %113, %cst_40 [1] : vector<16x10xf32> to vector<16xf32>
    %115 = vector.shape_cast %114 : vector<16xf32> to vector<16x1xf32>
    %116 = vector.broadcast %14 : vector<1x1xf32> to vector<16x1xf32>
    %117 = arith.addf %115, %116 : vector<16x1xf32>
    %118 = vector.shape_cast %117 : vector<16x1xf32> to vector<16x1xf32>
    %119 = vector.broadcast %118 : vector<16x1xf32> to vector<16x16xf32>
    %120 = arith.select %82, %119, %69 : vector<16x16xi1>, vector<16x16xf32>
    %cst_41 = arith.constant dense<0x7F800000> : vector<16xf32>
    %121 = vector.multi_reduction <minimumf>, %84, %cst_41 [1] : vector<16x16xf32> to vector<16xf32>
    %122 = vector.shape_cast %121 : vector<16xf32> to vector<16x1xf32>
    %123 = vector.broadcast %122 : vector<16x1xf32> to vector<16x16xf32>
    %124 = arith.cmpf ole, %84, %123 : vector<16x16xf32>
    %c16_i32_42 = arith.constant 16 : i32
    %125 = vector.shape_cast %6 : vector<1x16xi32> to vector<1x16xi32>
    %126 = vector.broadcast %125 : vector<1x16xi32> to vector<16x16xi32>
    %127 = vector.broadcast %c16_i32_42 : i32 to vector<16x16xi32>
    %128 = arith.select %124, %126, %127 : vector<16x16xi1>, vector<16x16xi32>
    %cst_43 = arith.constant dense<2147483647> : vector<16xi32>
    %129 = vector.multi_reduction <minsi>, %128, %cst_43 [1] : vector<16x16xi32> to vector<16xi32>
    %130 = vector.shape_cast %129 : vector<16xi32> to vector<16x1xi32>
    %131 = vector.broadcast %6 : vector<1x16xi32> to vector<16x16xi32>
    %132 = vector.broadcast %130 : vector<16x1xi32> to vector<16x16xi32>
    %133 = arith.cmpi eq, %131, %132 : vector<16x16xi32>
    %cst_44 = arith.constant 3.000000e+38 : f32
    %134 = vector.broadcast %cst_44 : f32 to vector<16x16xf32>
    %135 = arith.select %133, %134, %84 : vector<16x16xi1>, vector<16x16xf32>
    %136 = arith.extui %133 : vector<16x16xi1> to vector<16x16xi32>
    %137 = arith.sitofp %136 : vector<16x16xi32> to vector<16x16xf32>
    %cst_45 = arith.constant dense<0.000000e+00> : vector<16x3xf32>
    %138 = tpu.matmul %137, %4, %cst_45 {dimension_numbers = #tpu.dot_dimension_numbers<[1], [0], [0], [1], [0, 0, 1, 1], [], []>} : vector<16x16xf32>, vector<16x3xf32>, vector<16x3xf32> -> vector<16x3xf32>
    %139 = arith.subf %33, %138 : vector<16x3xf32>
    %140 = arith.mulf %139, %139 : vector<16x3xf32>
    %cst_46 = arith.constant dense<0.000000e+00> : vector<16xf32>
    %141 = vector.multi_reduction <add>, %140, %cst_46 [1] : vector<16x3xf32> to vector<16xf32>
    %142 = vector.shape_cast %141 : vector<16xf32> to vector<16x1xf32>
    %143 = math.sqrt %142 : vector<16x1xf32>
    %cst_47 = arith.constant dense<0.000000e+00> : vector<16x10xf32>
    %144 = tpu.matmul %138, %8, %cst_47 {dimension_numbers = #tpu.dot_dimension_numbers<[1], [0], [0], [1], [0, 0, 1, 1], [], []>} : vector<16x3xf32>, vector<3x10xf32>, vector<16x10xf32> -> vector<16x10xf32>
    %145 = arith.addf %36, %144 : vector<16x10xf32>
    %146 = vector.broadcast %143 : vector<16x1xf32> to vector<16x10xf32>
    %147 = vector.broadcast %9 : vector<1x10xf32> to vector<16x10xf32>
    %148 = arith.mulf %146, %147 : vector<16x10xf32>
    %149 = arith.addf %145, %148 : vector<16x10xf32>
    %cst_48 = arith.constant 0.000000e+00 : f32
    %150 = vector.broadcast %cst_48 : f32 to vector<16x10xf32>
    %151 = arith.cmpf ogt, %149, %150 : vector<16x10xf32>
    %cst_49 = arith.constant 2.000000e-01 : f32
    %152 = vector.broadcast %cst_49 : f32 to vector<16x10xf32>
    %153 = arith.mulf %152, %149 : vector<16x10xf32>
    %154 = arith.select %151, %149, %153 : vector<16x10xi1>, vector<16x10xf32>
    %cst_50 = arith.constant dense<0.000000e+00> : vector<16x10xf32>
    %155 = tpu.matmul %154, %11, %cst_50 {dimension_numbers = #tpu.dot_dimension_numbers<[1], [0], [0], [1], [0, 0, 1, 1], [], []>} : vector<16x10xf32>, vector<10x10xf32>, vector<16x10xf32> -> vector<16x10xf32>
    %156 = vector.broadcast %12 : vector<1x10xf32> to vector<16x10xf32>
    %157 = arith.addf %155, %156 : vector<16x10xf32>
    %cst_51 = arith.constant 0.000000e+00 : f32
    %158 = vector.broadcast %cst_51 : f32 to vector<16x10xf32>
    %159 = arith.cmpf ogt, %157, %158 : vector<16x10xf32>
    %cst_52 = arith.constant 2.000000e-01 : f32
    %160 = vector.broadcast %cst_52 : f32 to vector<16x10xf32>
    %161 = arith.mulf %160, %157 : vector<16x10xf32>
    %162 = arith.select %159, %157, %161 : vector<16x10xi1>, vector<16x10xf32>
    %163 = vector.broadcast %13 : vector<1x10xf32> to vector<16x10xf32>
    %164 = arith.mulf %162, %163 : vector<16x10xf32>
    %cst_53 = arith.constant dense<0.000000e+00> : vector<16xf32>
    %165 = vector.multi_reduction <add>, %164, %cst_53 [1] : vector<16x10xf32> to vector<16xf32>
    %166 = vector.shape_cast %165 : vector<16xf32> to vector<16x1xf32>
    %167 = vector.broadcast %14 : vector<1x1xf32> to vector<16x1xf32>
    %168 = arith.addf %166, %167 : vector<16x1xf32>
    %169 = vector.shape_cast %168 : vector<16x1xf32> to vector<16x1xf32>
    %170 = vector.broadcast %169 : vector<16x1xf32> to vector<16x16xf32>
    %171 = arith.select %133, %170, %120 : vector<16x16xi1>, vector<16x16xf32>
    %cst_54 = arith.constant dense<0x7F800000> : vector<16xf32>
    %172 = vector.multi_reduction <minimumf>, %135, %cst_54 [1] : vector<16x16xf32> to vector<16xf32>
    %173 = vector.shape_cast %172 : vector<16xf32> to vector<16x1xf32>
    %174 = vector.broadcast %173 : vector<16x1xf32> to vector<16x16xf32>
    %175 = arith.cmpf ole, %135, %174 : vector<16x16xf32>
    %c16_i32_55 = arith.constant 16 : i32
    %176 = vector.shape_cast %6 : vector<1x16xi32> to vector<1x16xi32>
    %177 = vector.broadcast %176 : vector<1x16xi32> to vector<16x16xi32>
    %178 = vector.broadcast %c16_i32_55 : i32 to vector<16x16xi32>
    %179 = arith.select %175, %177, %178 : vector<16x16xi1>, vector<16x16xi32>
    %cst_56 = arith.constant dense<2147483647> : vector<16xi32>
    %180 = vector.multi_reduction <minsi>, %179, %cst_56 [1] : vector<16x16xi32> to vector<16xi32>
    %181 = vector.shape_cast %180 : vector<16xi32> to vector<16x1xi32>
    %182 = vector.broadcast %6 : vector<1x16xi32> to vector<16x16xi32>
    %183 = vector.broadcast %181 : vector<16x1xi32> to vector<16x16xi32>
    %184 = arith.cmpi eq, %182, %183 : vector<16x16xi32>
    %185 = arith.extui %184 : vector<16x16xi1> to vector<16x16xi32>
    %186 = arith.sitofp %185 : vector<16x16xi32> to vector<16x16xf32>
    %cst_57 = arith.constant dense<0.000000e+00> : vector<16x3xf32>
    %187 = tpu.matmul %186, %4, %cst_57 {dimension_numbers = #tpu.dot_dimension_numbers<[1], [0], [0], [1], [0, 0, 1, 1], [], []>} : vector<16x16xf32>, vector<16x3xf32>, vector<16x3xf32> -> vector<16x3xf32>
    %188 = arith.subf %33, %187 : vector<16x3xf32>
    %189 = arith.mulf %188, %188 : vector<16x3xf32>
    %cst_58 = arith.constant dense<0.000000e+00> : vector<16xf32>
    %190 = vector.multi_reduction <add>, %189, %cst_58 [1] : vector<16x3xf32> to vector<16xf32>
    %191 = vector.shape_cast %190 : vector<16xf32> to vector<16x1xf32>
    %192 = math.sqrt %191 : vector<16x1xf32>
    %cst_59 = arith.constant dense<0.000000e+00> : vector<16x10xf32>
    %193 = tpu.matmul %187, %8, %cst_59 {dimension_numbers = #tpu.dot_dimension_numbers<[1], [0], [0], [1], [0, 0, 1, 1], [], []>} : vector<16x3xf32>, vector<3x10xf32>, vector<16x10xf32> -> vector<16x10xf32>
    %194 = arith.addf %36, %193 : vector<16x10xf32>
    %195 = vector.broadcast %192 : vector<16x1xf32> to vector<16x10xf32>
    %196 = vector.broadcast %9 : vector<1x10xf32> to vector<16x10xf32>
    %197 = arith.mulf %195, %196 : vector<16x10xf32>
    %198 = arith.addf %194, %197 : vector<16x10xf32>
    %cst_60 = arith.constant 0.000000e+00 : f32
    %199 = vector.broadcast %cst_60 : f32 to vector<16x10xf32>
    %200 = arith.cmpf ogt, %198, %199 : vector<16x10xf32>
    %cst_61 = arith.constant 2.000000e-01 : f32
    %201 = vector.broadcast %cst_61 : f32 to vector<16x10xf32>
    %202 = arith.mulf %201, %198 : vector<16x10xf32>
    %203 = arith.select %200, %198, %202 : vector<16x10xi1>, vector<16x10xf32>
    %cst_62 = arith.constant dense<0.000000e+00> : vector<16x10xf32>
    %204 = tpu.matmul %203, %11, %cst_62 {dimension_numbers = #tpu.dot_dimension_numbers<[1], [0], [0], [1], [0, 0, 1, 1], [], []>} : vector<16x10xf32>, vector<10x10xf32>, vector<16x10xf32> -> vector<16x10xf32>
    %205 = vector.broadcast %12 : vector<1x10xf32> to vector<16x10xf32>
    %206 = arith.addf %204, %205 : vector<16x10xf32>
    %cst_63 = arith.constant 0.000000e+00 : f32
    %207 = vector.broadcast %cst_63 : f32 to vector<16x10xf32>
    %208 = arith.cmpf ogt, %206, %207 : vector<16x10xf32>
    %cst_64 = arith.constant 2.000000e-01 : f32
    %209 = vector.broadcast %cst_64 : f32 to vector<16x10xf32>
    %210 = arith.mulf %209, %206 : vector<16x10xf32>
    %211 = arith.select %208, %206, %210 : vector<16x10xi1>, vector<16x10xf32>
    %212 = vector.broadcast %13 : vector<1x10xf32> to vector<16x10xf32>
    %213 = arith.mulf %211, %212 : vector<16x10xf32>
    %cst_65 = arith.constant dense<0.000000e+00> : vector<16xf32>
    %214 = vector.multi_reduction <add>, %213, %cst_65 [1] : vector<16x10xf32> to vector<16xf32>
    %215 = vector.shape_cast %214 : vector<16xf32> to vector<16x1xf32>
    %216 = vector.broadcast %14 : vector<1x1xf32> to vector<16x1xf32>
    %217 = arith.addf %215, %216 : vector<16x1xf32>
    %218 = vector.shape_cast %217 : vector<16x1xf32> to vector<16x1xf32>
    %219 = vector.broadcast %218 : vector<16x1xf32> to vector<16x16xf32>
    %220 = arith.select %184, %219, %171 : vector<16x16xi1>, vector<16x16xf32>
    %c0_66 = arith.constant 0 : index
    %c0_67 = arith.constant 0 : index
    %c0_68 = arith.constant 0 : index
    %221 = vector.load %arg4[%c0_66, %c0_67, %c0_68] : memref<1x16x128xf32, #tpu.memory_space<vmem>>, vector<1x16x128xf32>
    %222 = vector.shape_cast %221 : vector<1x16x128xf32> to vector<16x128xf32>
    %cst_69 = arith.constant dense<0.000000e+00> : vector<16x128xf32>
    %223 = tpu.matmul %220, %222, %cst_69 {dimension_numbers = #tpu.dot_dimension_numbers<[1], [0], [0], [1], [0, 0, 1, 1], [], []>} : vector<16x16xf32>, vector<16x128xf32>, vector<16x128xf32> -> vector<16x128xf32>
    %c0_70 = arith.constant 0 : index
    %c0_71 = arith.constant 0 : index
    %c0_72 = arith.constant 0 : index
    %224 = vector.load %arg6[%c0_70, %c0_71, %c0_72] : memref<1x16x128xf32, #tpu.memory_space<vmem>>, vector<1x16x128xf32>
    %225 = vector.shape_cast %224 : vector<1x16x128xf32> to vector<16x128xf32>
    %226 = vector.shape_cast %223 : vector<16x128xf32> to vector<1x16x128xf32>
    tpu.vector_store %arg6[%c0_70, %c0_71, %c0_72], %226 {strides = array<i32>} : memref<1x16x128xf32, #tpu.memory_space<vmem>>, vector<1x16x128xf32>,
    return
  }
  func.func @transform_0(%arg0: i32, %arg1: i32) -> (i32, i32, i32) {
    %c0_i32 = arith.constant 0 : i32
    %c0_i32_0 = arith.constant 0 : i32
    return %arg0, %arg1, %c0_i32 : i32, i32, i32
  }
  func.func @transform_1(%arg0: i32, %arg1: i32) -> (i32, i32, i32) {
    %c0_i32 = arith.constant 0 : i32
    %c0_i32_0 = arith.constant 0 : i32
    %c0_i32_1 = arith.constant 0 : i32
    return %arg0, %c0_i32, %c0_i32_0 : i32, i32, i32
  }
  func.func @transform_2(%arg0: i32, %arg1: i32) -> (i32, i32, i32) {
    %c0_i32 = arith.constant 0 : i32
    %c0_i32_0 = arith.constant 0 : i32
    %c0_i32_1 = arith.constant 0 : i32
    return %arg0, %c0_i32, %c0_i32_0 : i32, i32, i32
  }
  func.func @transform_3(%arg0: i32, %arg1: i32) -> (i32, i32) {
    %c0_i32 = arith.constant 0 : i32
    %c0_i32_0 = arith.constant 0 : i32
    %c0_i32_1 = arith.constant 0 : i32
    return %c0_i32, %c0_i32_0 : i32, i32
  }
  func.func @transform_4(%arg0: i32, %arg1: i32) -> (i32, i32, i32) {
    %c0_i32 = arith.constant 0 : i32
    %c0_i32_0 = arith.constant 0 : i32
    return %arg0, %arg1, %c0_i32 : i32, i32, i32
  }
}

</mosaic_0001>

<llo_original>
// kernel: tpu_custom_call.1
$region0: #{tpu_custom_call.1}
  #allocation0 [shape = 'u32[]', space=smem, size = 0x4, offset = 0x4, fixed_abs, tag = 'smem constant byte address 0x4 - core index']
  #allocation1 [shape = 'u32[144,128]{1,0:T(1,128)}', space=vmem, size = 0x12000, scoped, tag = 'internal scratch']
  %s0 = inlined_call_operand.hbm [shape: f32[2,16,4], index: 0, kind: input, shape index: {}]
  %s1 = inlined_call_operand.hbm [shape: f32[2,16,4], index: 1, kind: input, shape index: {}]
  %s2 = inlined_call_operand.hbm [shape: f32[2,16,128], index: 2, kind: input, shape index: {}]
  %s3 = inlined_call_operand.hbm [shape: f32[21,10], index: 3, kind: input, shape index: {}]
  %s4 = inlined_call_operand.hbm [shape: f32[2,16,128], index: 4, kind: output, shape index: {}]
  %s5 = sld [smem:[#allocation0]]
  $region65: #{tpu_custom_call.1} parent=0
    _
  %s7 = ssub.s32 1, %s5
  %s8 = scalar_select 0, %s7, %s5
  $region1: #{tpu_custom_call.1} parent=0
    #allocation2 [shape = 'u8[16384]{0}', space=vmem, size = 0x4000, scoped, tag = 'input window, operand 0']
    #allocation3 [shape = 's32[2]{0}', space=sflag, size = 0x8, scoped, tag = 'scoped memory for tpu_custom_call.1']
    #allocation4 [shape = 's32[2]{0}', space=sflag, size = 0x8, scoped, tag = 'scoped memory for tpu_custom_call.1']
    #allocation5 [shape = 'u8[16384]{0}', space=vmem, size = 0x4000, scoped, tag = 'input window, operand 1']
    #allocation6 [shape = 's32[2]{0}', space=sflag, size = 0x8, scoped, tag = 'scoped memory for tpu_custom_call.1']
    #allocation7 [shape = 'u8[16384]{0}', space=vmem, size = 0x4000, scoped, tag = 'input window, operand 2']
    #allocation8 [shape = 'u8[12288]{0}', space=vmem, size = 0x3000, scoped, tag = 'input window, operand 3, single buffered']
    #allocation9 [shape = 's32[1]{0}', space=sflag, size = 0x4, scoped, tag = 'scoped memory for tpu_custom_call.1']
    #allocation10 [shape = 'u8[16384]{0}', space=vmem, size = 0x4000, scoped, tag = 'output window, operand 0']
    %9 = vsyncpa [#allocation3], 0
    %s10 = scalar_lea.sflag [#allocation3], 1
    %11 = vsyncpa %s10, 0
    %12 = vsyncpa [#allocation6], 0
    %s13 = scalar_lea.sflag [#allocation6], 1
    %14 = vsyncpa %s13, 0
    %15 = vsyncpa [#allocation9], 0
    %16 = vsyncpa [#allocation4], 0
    %s17 = scalar_lea.sflag [#allocation4], 1
    %18 = vsyncpa %s17, 0
    loop: start=0, step=1, limit=4
    $region2: #{tpu_custom_call.1} parent=1 // loop_pre_header
      _
    $region3: #{tpu_custom_call.1} parent=1 // loop_header
      %s20 = sphi 0, %s24
      %p21 = scmp.ge.s32.totalorder %s20, 4
      %s27 = sphi 0, %s39
      %s28 = sphi 0, %s35
      %s29 = sphi 0, %s27
      %s30 = sphi 0, %s28
      %s31 = sphi 0, %s29
      %s32 = sphi 0, %s30
      %s44 = sphi 0, %s46
      %s47 = sphi 0, %s44
      %s48 = sphi 0, %s47
      %s64 = sphi 0, %s48
      %s70 = sphi 0, %s72
      %s73 = sphi 0, %s70
      %s74 = sphi 0, %s73
      %s90 = sphi 0, %s74
      %s96 = sphi 0, %s98
      %s99 = sphi 0, %s96
      %s100 = sphi 0, %s99
      %s116 = sphi 0, %s100
      %s120 = sphi 0, %s120
      %s122 = sphi 0, %s120
      %s123 = sphi 0, %s122
      %s137 = sphi 0, %s123
      %s145 = sphi 0, %s147
      %s148 = sphi 0, %s145
      %s149 = sphi 0, %s148
      %s165 = sphi 0, %s149
    $region4: #{tpu_custom_call.1} parent=1 // loop_header_branch
      %23 = sbr.rel (%p21) target = $region8
    $region5: #{tpu_custom_call.1} parent=1 // loop_body
      %s25 = ssub.s32 %s20, 1
      %s26 = ssub.s32 %s20, 2
      %s33 = sadd.s32 1, %s28
      %p34 = scmp.ge.s32.totalorder %s33, 1
      %s35 = scalar_select %p34, 0, %s33
      %s36 = sadd.s32 1, %s27
      %s37 = scalar_select %p34, %s36, %s27
      %p38 = scmp.ge.s32.totalorder %s37, 2
      %s39 = scalar_select %p38, 0, %s37
      %s40 = ssub.s32 %s27, %s39
      %s41 = ssub.s32 %s28, %s35
      %s42 = sor.u32 %s40, %s41
      %p43 = scmp.eq.s32.totalorder %s42, 0
      %s45 = sadd.s32 %s44, 1
      %s46 = scalar_select %p43, %s44, %s45
      %p49 = pneg %p43
      %p50 = scmp.eq.s32.totalorder %s20, 1
      %p51 = por %p49, %p50
      %p52 = scmp.ne.s32.totalorder %s44, %s47
      %p53 = scmp.eq.s32.totalorder %s20, 0
      %p54 = por %p52, %p53
      %p55 = scmp.ne.s32.totalorder %s44, %s47
      %p56 = scmp.eq.s32.totalorder %s25, 1
      %p57 = por %p55, %p56
      %p58 = scmp.ne.s32.totalorder %s47, %s48
      %p59 = scmp.eq.s32.totalorder %s25, 0
      %p60 = por %p58, %p59
      %p61 = scmp.ne.s32.totalorder %s47, %s48
      %p62 = scmp.eq.s32.totalorder %s26, 1
      %p63 = por %p61, %p62
      %p65 = scmp.ne.s32.totalorder %s48, %s64
      %p66 = scmp.eq.s32.totalorder %s26, 0
      %p67 = por %p65, %p66
      %s68 = ssub.s32 %s27, %s39
      %p69 = scmp.eq.s32.totalorder %s68, 0
      %s71 = sadd.s32 %s70, 1
      %s72 = scalar_select %p69, %s70, %s71
      %p75 = pneg %p69
      %p76 = scmp.eq.s32.totalorder %s20, 1
      %p77 = por %p75, %p76
      %p78 = scmp.ne.s32.totalorder %s70, %s73
      %p79 = scmp.eq.s32.totalorder %s20, 0
      %p80 = por %p78, %p79
      %p81 = scmp.ne.s32.totalorder %s70, %s73
      %p82 = scmp.eq.s32.totalorder %s25, 1
      %p83 = por %p81, %p82
      %p84 = scmp.ne.s32.totalorder %s73, %s74
      %p85 = scmp.eq.s32.totalorder %s25, 0
      %p86 = por %p84, %p85
      %p87 = scmp.ne.s32.totalorder %s73, %s74
      %p88 = scmp.eq.s32.totalorder %s26, 1
      %p89 = por %p87, %p88
      %p91 = scmp.ne.s32.totalorder %s74, %s90
      %p92 = scmp.eq.s32.totalorder %s26, 0
      %p93 = por %p91, %p92
      %s94 = ssub.s32 %s27, %s39
      %p95 = scmp.eq.s32.totalorder %s94, 0
      %s97 = sadd.s32 %s96, 1
      %s98 = scalar_select %p95, %s96, %s97
      %p101 = pneg %p95
      %p102 = scmp.eq.s32.totalorder %s20, 1
      %p103 = por %p101, %p102
      %p104 = scmp.ne.s32.totalorder %s96, %s99
      %p105 = scmp.eq.s32.totalorder %s20, 0
      %p106 = por %p104, %p105
      %p107 = scmp.ne.s32.totalorder %s96, %s99
      %p108 = scmp.eq.s32.totalorder %s25, 1
      %p109 = por %p107, %p108
      %p110 = scmp.ne.s32.totalorder %s99, %s100
      %p111 = scmp.eq.s32.totalorder %s25, 0
      %p112 = por %p110, %p111
      %p113 = scmp.ne.s32.totalorder %s99, %s100
      %p114 = scmp.eq.s32.totalorder %s26, 1
      %p115 = por %p113, %p114
      %p117 = scmp.ne.s32.totalorder %s100, %s116
      %p118 = scmp.eq.s32.totalorder %s26, 0
      %p119 = por %p117, %p118
      %s121 = sadd.s32 %s120, 1
      %p124 = scmp.eq.s32.totalorder %s20, 1
      %p125 = scmp.ne.s32.totalorder %s120, %s122
      %p126 = scmp.eq.s32.totalorder %s20, 0
      %p127 = por %p125, %p126
      %p128 = scmp.ne.s32.totalorder %s120, %s122
      %p129 = scmp.eq.s32.totalorder %s25, 1
      %p130 = por %p128, %p129
      %p131 = scmp.ne.s32.totalorder %s122, %s123
      %p132 = scmp.eq.s32.totalorder %s25, 0
      %p133 = por %p131, %p132
      %p134 = scmp.ne.s32.totalorder %s122, %s123
      %p135 = scmp.eq.s32.totalorder %s26, 1
      %p136 = por %p134, %p135
      %p138 = scmp.ne.s32.totalorder %s123, %s137
      %p139 = scmp.eq.s32.totalorder %s26, 0
      %p140 = por %p138, %p139
      %s141 = ssub.s32 %s27, %s39
      %s142 = ssub.s32 %s28, %s35
      %s143 = sor.u32 %s141, %s142
      %p144 = scmp.eq.s32.totalorder %s143, 0
      %s146 = sadd.s32 %s145, 1
      %s147 = scalar_select %p144, %s145, %s146
      %p150 = pneg %p144
      %p151 = scmp.eq.s32.totalorder %s20, 1
      %p152 = por %p150, %p151
      %p153 = scmp.ne.s32.totalorder %s145, %s148
      %p154 = scmp.eq.s32.totalorder %s20, 0
      %p155 = por %p153, %p154
      %p156 = scmp.ne.s32.totalorder %s145, %s148
      %p157 = scmp.eq.s32.totalorder %s25, 1
      %p158 = por %p156, %p157
      %p159 = scmp.ne.s32.totalorder %s148, %s149
      %p160 = scmp.eq.s32.totalorder %s25, 0
      %p161 = por %p159, %p160
      %p162 = scmp.ne.s32.totalorder %s148, %s149
      %p163 = scmp.eq.s32.totalorder %s26, 1
      %p164 = por %p162, %p163
      %p166 = scmp.ne.s32.totalorder %s149, %s165
      %p167 = scmp.eq.s32.totalorder %s26, 0
      %p168 = por %p166, %p167
      %p169 = scmp.le.s32.totalorder 1, %s20
      %p170 = scmp.lt.s32.totalorder %s20, 3
      %p171 = pnand %p169, %p170
      %p172 = pneg %p171
      // Predicated region
      $region9: #{tpu_custom_call.1} parent=5 // pred_check
        _
      $region10: #{tpu_custom_call.1} parent=5 // pred_check_branch
        %174 = sbr.rel (%p171) target = $region12
      $region11: #{tpu_custom_call.1} parent=5 // pred_region
        %s175 = ssub.s32 %s20, 1
        // Predicated region
        $region13: #{tpu_custom_call.1} parent=11 // pred_check
          %p176 = pneg %p133
        $region14: #{tpu_custom_call.1} parent=11 // pred_check_branch
          %178 = sbr.rel (%p176) target = $region16
        $region15: #{tpu_custom_call.1} parent=11 // pred_region
          %s180 = ssub.s32 384, 384
          %181 = vsyncadd [#allocation9], %s180
          %s182 = sshll.u32 [#allocation8], 4
          %s183 = int_to_ptr.vmem [resolvable:$true] %s182
          %188 = dma.hbm_to_vmem [thread:$0]  %s3, 384, %s183, [#allocation9], 128, 128, 8
        $region16: #{tpu_custom_call.1} parent=11 // pred_fallthru
          _
      $region12: #{tpu_custom_call.1} parent=5 // pred_fallthru
        _
      %p189 = scmp.lt.s32.totalorder %s20, 2
      // Predicated region
      $region17: #{tpu_custom_call.1} parent=5 // pred_check
        %p190 = pneg %p189
      $region18: #{tpu_custom_call.1} parent=5 // pred_check_branch
        %192 = sbr.rel (%p190) target = $region20
      $region19: #{tpu_custom_call.1} parent=5 // pred_region
        // Predicated region
        $region21: #{tpu_custom_call.1} parent=19 // pred_check
          %p193 = pneg %p54
        $region22: #{tpu_custom_call.1} parent=19 // pred_check_branch
          %195 = sbr.rel (%p193) target = $region24
        $region23: #{tpu_custom_call.1} parent=19 // pred_region
          %s196 = sand.u32 %s44, 1
          %s197 = scalar_lea.sflag [#allocation3], %s196
          %s198 = sand.u32 %s44, 1
          %s199 = smul.addr %s198, 16
          %s200 = scalar_lea.vmem [#allocation2], %s199
          %s201 = smul.u32 2, %s28
          %s203 = ssub.s32 256, 256
          %204 = vsyncadd %s197, %s203
          %s205 = smul.addr %s27, 2
          %s206 = sadd.s32 %s201, %s205
          %s207 = smul.addr %s206, 128
          %s208 = scalar_lea.hbm %s0, %s207
          %s209 = sshll.u32 %s200, 4
          %s210 = int_to_ptr.vmem [resolvable:$true] %s209
          %215 = dma.hbm_to_vmem [thread:$0]  %s208, 256, %s210, %s197, 128, 128, 8
        $region24: #{tpu_custom_call.1} parent=19 // pred_fallthru
          _
        // Predicated region
        $region25: #{tpu_custom_call.1} parent=19 // pred_check
          %p216 = pneg %p80
        $region26: #{tpu_custom_call.1} parent=19 // pred_check_branch
          %218 = sbr.rel (%p216) target = $region28
        $region27: #{tpu_custom_call.1} parent=19 // pred_region
          %s219 = sand.u32 %s20, 1
          %s220 = scalar_lea.sflag [#allocation6], %s219
          %s221 = sand.u32 %s70, 1
          %s222 = smul.addr %s221, 16
          %s223 = scalar_lea.vmem [#allocation5], %s222
          %s225 = ssub.s32 256, 256
          %226 = vsyncadd %s220, %s225
          %s227 = smul.addr %s27, 2
          %s228 = smul.addr %s227, 128
          %s229 = scalar_lea.hbm %s1, %s228
          %s230 = sshll.u32 %s223, 4
          %s231 = int_to_ptr.vmem [resolvable:$true] %s230
          %236 = dma.hbm_to_vmem [thread:$0]  %s229, 256, %s231, %s220, 128, 128, 8
        $region28: #{tpu_custom_call.1} parent=19 // pred_fallthru
          _
        // Predicated region
        $region29: #{tpu_custom_call.1} parent=19 // pred_check
          %p237 = pneg %p106
        $region30: #{tpu_custom_call.1} parent=19 // pred_check_branch
          %239 = sbr.rel (%p237) target = $region32
        $region31: #{tpu_custom_call.1} parent=19 // pred_region
          %s240 = sand.u32 %s20, 1
          %s241 = scalar_lea.sflag [#allocation6], %s240
          %s242 = sand.u32 %s96, 1
          %s243 = smul.addr %s242, 16
          %s244 = scalar_lea.vmem [#allocation7], %s243
          %s246 = ssub.s32 256, 256
          %247 = vsyncadd %s241, %s246
          %s248 = smul.addr %s27, 2
          %s249 = smul.addr %s248, 128
          %s250 = scalar_lea.hbm %s2, %s249
          %s251 = sshll.u32 %s244, 4
          %s252 = int_to_ptr.vmem [resolvable:$true] %s251
          %257 = dma.hbm_to_vmem [thread:$0]  %s250, 256, %s252, %s241, 128, 128, 8
        $region32: #{tpu_custom_call.1} parent=19 // pred_fallthru
          _
      $region20: #{tpu_custom_call.1} parent=5 // pred_fallthru
        _
      %p258 = scmp.le.s32.totalorder 1, %s20
      %p259 = scmp.lt.s32.totalorder %s20, 3
      %p260 = pnand %p258, %p259
      %p261 = pneg %p260
      // Predicated region
      $region33: #{tpu_custom_call.1} parent=5 // pred_check
        _
      $region34: #{tpu_custom_call.1} parent=5 // pred_check_branch
        %263 = sbr.rel (%p260) target = $region36
      $region35: #{tpu_custom_call.1} parent=5 // pred_region
        %s264 = ssub.s32 %s20, 1
        %s265 = sand.u32 %s47, 1
        %s266 = scalar_lea.sflag [#allocation3], %s265
        %s267 = sand.u32 %s47, 1
        %s268 = smul.addr %s267, 16
        %s269 = scalar_lea.vmem [#allocation2], %s268
        // Predicated region
        $region37: #{tpu_custom_call.1} parent=35 // pred_check
          %p270 = pneg %p60
        $region38: #{tpu_custom_call.1} parent=35 // pred_check_branch
          %272 = sbr.rel (%p270) target = $region40
        $region39: #{tpu_custom_call.1} parent=35 // pred_region
          %273 = dma.done %s266, 256
        $region40: #{tpu_custom_call.1} parent=35 // pred_fallthru
          _
        %s274 = sand.u32 %s25, 1
        %s275 = scalar_lea.sflag [#allocation6], %s274
        %s276 = sand.u32 %s73, 1
        %s277 = smul.addr %s276, 16
        %s278 = scalar_lea.vmem [#allocation5], %s277
        // Predicated region
        $region41: #{tpu_custom_call.1} parent=35 // pred_check
          %p279 = pneg %p86
        $region42: #{tpu_custom_call.1} parent=35 // pred_check_branch
          %281 = sbr.rel (%p279) target = $region44
        $region43: #{tpu_custom_call.1} parent=35 // pred_region
          %282 = dma.done %s275, 256
        $region44: #{tpu_custom_call.1} parent=35 // pred_fallthru
          _
        %s283 = sand.u32 %s25, 1
        %s284 = scalar_lea.sflag [#allocation6], %s283
        %s285 = sand.u32 %s99, 1
        %s286 = smul.addr %s285, 16
        %s287 = scalar_lea.vmem [#allocation7], %s286
        // Predicated region
        $region45: #{tpu_custom_call.1} parent=35 // pred_check
          %p288 = pneg %p112
        $region46: #{tpu_custom_call.1} parent=35 // pred_check_branch
          %290 = sbr.rel (%p288) target = $region48
        $region47: #{tpu_custom_call.1} parent=35 // pred_region
          %291 = dma.done %s284, 256
        $region48: #{tpu_custom_call.1} parent=35 // pred_fallthru
          _
        // Predicated region
        $region49: #{tpu_custom_call.1} parent=35 // pred_check
          %p292 = pneg %p133
        $region50: #{tpu_custom_call.1} parent=35 // pred_check_branch
          %294 = sbr.rel (%p292) target = $region52
        $region51: #{tpu_custom_call.1} parent=35 // pred_region
          %295 = dma.done [#allocation9], 384
        $region52: #{tpu_custom_call.1} parent=35 // pred_fallthru
          _
        %s296 = sand.u32 %s47, 1
        %s297 = scalar_lea.sflag [#allocation3], %s296
        %s298 = sand.u32 %s47, 1
        %s299 = smul.addr %s298, 16
        %s300 = scalar_lea.vmem [#allocation2], %s299
        %p301 = pneg %p60
        %p302 = pneg %p57
        %s303 = sand.u32 %s25, 1
        %s304 = scalar_lea.sflag [#allocation6], %s303
        %s305 = sand.u32 %s73, 1
        %s306 = smul.addr %s305, 16
        %s307 = scalar_lea.vmem [#allocation5], %s306
        %p308 = pneg %p86
        %p309 = pneg %p83
        %s310 = sand.u32 %s25, 1
        %s311 = scalar_lea.sflag [#allocation6], %s310
        %s312 = sand.u32 %s99, 1
        %s313 = smul.addr %s312, 16
        %s314 = scalar_lea.vmem [#allocation7], %s313
        %p315 = pneg %p112
        %p316 = pneg %p109
        %p317 = pneg %p133
        %p318 = pneg %p130
        %p319 = pneg %p161
        %p320 = pneg %p158
        %s321 = sand.u32 %s148, 1
        %s322 = scalar_lea.sflag [#allocation4], %s321
        %s323 = sand.u32 %s148, 1
        %s324 = smul.addr %s323, 16
        %s325 = scalar_lea.vmem [#allocation10], %s324
        %s326 = smul.u32 2, %s30
        %s327 = smul.u32 2, %s30
        %v328 = vld [vmem:[%s269] sm:$0xff]
        %v329 = vld [vmem:[%s269 + $0x8] sm:$0xff]
        %v330 = vld [vmem:[%s278] sm:$0xff]
        %v331 = vld [vmem:[%s278 + $0x8] sm:$0xff]
        %vm332 = vcmask 31744
        %v334 = vsel %vm332, %v328, 0
        %v337 = vsel %vm332, %v329, 0
        %v340 = vsel %vm332, %v330, 0
        %v343 = vsel %vm332, %v331, 0
        %345 = vmatprep.subr.mxu0 0.0
        %346 = vmatpush1.xpose.msra.mxu0 %v340
        %347 = vmatprep.subr.mxu0 0.0
        %348 = vmatpush1.xpose.msra.mxu0 %v343
        %349 = vmatprep.subr.mxu0 0.0
        %350 = vmatpush1.xpose.msra.mxu0 0.0
        %351 = vmatprep.subr.mxu0 0.0
        %352 = vmatpush1.xpose.msra.mxu0 0.0
        %353 = vmatprep.subr.mxu0 0.0
        %354 = vmatpush1.xpose.msra.mxu0 0.0
        %355 = vmatprep.subr.mxu0 0.0
        %356 = vmatpush1.xpose.msra.mxu0 0.0
        %357 = vmatprep.subr.mxu0 0.0
        %358 = vmatpush1.xpose.msra.mxu0 0.0
        %359 = vmatprep.subr.mxu0 0.0
        %360 = vmatpush1.xpose.msra.mxu0 0.0
        %361 = vmatprep.subr.mxu0 0.0
        %362 = vmatpush1.xpose.msra.mxu0 0.0
        %363 = vmatprep.subr.mxu0 0.0
        %364 = vmatpush1.xpose.msra.mxu0 0.0
        %365 = vmatprep.subr.mxu0 0.0
        %366 = vmatpush1.xpose.msra.mxu0 0.0
        %367 = vmatprep.subr.mxu0 0.0
        %368 = vmatpush1.xpose.msra.mxu0 0.0
        %369 = vmatprep.subr.mxu0 0.0
        %370 = vmatpush1.xpose.msra.mxu0 0.0
        %371 = vmatprep.subr.mxu0 0.0
        %372 = vmatpush1.xpose.msra.mxu0 0.0
        %373 = vmatprep.subr.mxu0 0.0
        %374 = vmatpush1.xpose.msra.mxu0 0.0
        %375 = vmatprep.subr.mxu0 0.0
        %376 = vmatpush1.xpose.msra.mxu0 0.0
        %377 = vmatprep.subr.mxu0 0.0
        %378 = vmatpush1.xpose.msra.mxu0 0.0
        %379 = vmatprep.subr.mxu0 0.0
        %380 = vmatpush1.xpose.msra.mxu0 0.0
        %381 = vmatprep.subr.mxu0 0.0
        %382 = vmatpush1.xpose.msra.mxu0 0.0
        %383 = vmatprep.subr.mxu0 0.0
        %384 = vmatpush1.xpose.msra.mxu0 0.0
        %385 = vmatprep.subr.mxu0 0.0
        %386 = vmatpush1.xpose.msra.mxu0 0.0
        %387 = vmatprep.subr.mxu0 0.0
        %388 = vmatpush1.xpose.msra.mxu0 0.0
        %389 = vmatprep.subr.mxu0 0.0
        %390 = vmatpush1.xpose.msra.mxu0 0.0
        %391 = vmatprep.subr.mxu0 0.0
        %392 = vmatpush1.xpose.msra.mxu0 0.0
        %393 = vmatprep.subr.mxu0 0.0
        %394 = vmatpush1.xpose.msra.mxu0 0.0
        %395 = vmatprep.subr.mxu0 0.0
        %396 = vmatpush1.xpose.msra.mxu0 0.0
        %397 = vmatprep.subr.mxu0 0.0
        %398 = vmatpush1.xpose.msra.mxu0 0.0
        %399 = vmatprep.subr.mxu0 0.0
        %400 = vmatpush1.xpose.msra.mxu0 0.0
        %401 = vmatprep.subr.mxu0 0.0
        %402 = vmatpush1.xpose.msra.mxu0 0.0
        %403 = vmatprep.subr.mxu0 0.0
        %404 = vmatpush1.xpose.msra.mxu0 0.0
        %405 = vmatprep.subr.mxu0 0.0
        %406 = vmatpush1.xpose.msra.mxu0 0.0
        %407 = vmatprep.subr.mxu0 0.0
        %408 = vmatpush1.xpose.msra.mxu0 0.0
        %409 = vmatprep.mubr.f32.mxu0 0.0
        %410 = vmatmul.mubr.f32.gmra.mrb[0].mxu0 %v334
        %v411 = vpop.f32.mrb[0].mxu0
        %v412 = vadd.f32 0.0, %v411
        %v413 = vpop.f32.mrb[0].mxu0
        %414 = vmatprep.mubr.f32.mxu0 0.0
        %415 = vmatmul.mubr.f32.gmra.mrb[0].mxu0 %v337
        %v416 = vpop.f32.mrb[0].mxu0
        %v417 = vadd.f32 0.0, %v416
        %v418 = vpop.f32.mrb[0].mxu0
        %419 = vdwg.mxu0
        %v420 = vlaneseq
        %v421 = vand.u32 %v420, 127
        %v422 = vld [vmem:[#allocation8] sm:$0x7]
        %v423 = vld [vmem:[#allocation8 + $0x3] sm:$0x7]
        %v424 = vld [vmem:[#allocation8 + $0x6] sm:$0x1]
        %v425 = vld [vmem:[#allocation8 + $0x7] sm:$0x1]
        %v426 = vld [vmem:[#allocation8 + $0x8] sm:$0xff]
        %v427 = vld [vmem:[#allocation8 + $0x10] sm:$0x3]
        %v428 = vld [vmem:[#allocation8 + $0x12] sm:$0x1]
        %v429 = vld [vmem:[#allocation8 + $0x13] sm:$0x1]
        %v430 = vld [vmem:[#allocation8 + $0x14] sm:$0x1]
        %vm431 = vcmask 130048
        %v432 = vsel %vm431, %v412, inf
        %433 = vmin.xlane.f32.xlu0 %v432
        %v434 = vpop.xlane.xlu0 %433
        %v435 = vsel %vm431, %v417, inf
        %436 = vmin.xlane.f32.xlu0 %v435
        %v437 = vpop.xlane.xlu0 %436
        %vm438 = vcmp.le.f32.partialorder %v412, %v434
        %vm439 = vcmp.le.f32.partialorder %v417, %v437
        %v440 = vsel %vm438, %v421, 16
        %v441 = vsel %vm439, %v421, 16
        %v442 = vsel %vm431, %v440, 2147483647
        %v443 = vand.u32 %v442, 65535
        %v444 = vshra.s32 %v442, 16
        %v445 = vcvt.s32.f32 %v443
        %v446 = vcvt.s32.f32 %v444
        %447 = vmin.xlane.f32.xlu0 %v446
        %v448 = vpop.xlane.xlu0 %447
        %vm449 = vcmp.eq.f32.partialorder %v446, %v448
        %v450 = vsel %vm449, %v445, inf
        %451 = vmin.xlane.f32.xlu0 %v450
        %v452 = vpop.xlane.xlu0 %451
        %v453 = vcvt.f32.s32 %v452
        %v454 = vcvt.f32.s32 %v448
        %v455 = vshll.u32 %v454, 16
        %v456 = vadd.s32 %v455, %v453
        %v457 = vsel %vm431, %v441, 2147483647
        %v458 = vand.u32 %v457, 65535
        %v459 = vshra.s32 %v457, 16
        %v460 = vcvt.s32.f32 %v458
        %v461 = vcvt.s32.f32 %v459
        %462 = vmin.xlane.f32.xlu0 %v461
        %v463 = vpop.xlane.xlu0 %462
        %vm464 = vcmp.eq.f32.partialorder %v461, %v463
        %v465 = vsel %vm464, %v460, inf
        %466 = vmin.xlane.f32.xlu0 %v465
        %v467 = vpop.xlane.xlu0 %466
        %v468 = vcvt.f32.s32 %v467
        %v469 = vcvt.f32.s32 %v463
        %v470 = vshll.u32 %v469, 16
        %v471 = vadd.s32 %v470, %v468
        %vm472 = vcmp.eq.s32.totalorder %v421, %v456
        %vm473 = vcmp.eq.s32.totalorder %v421, %v471
        %v474 = vsel %vm472, 3e+38, %v412
        %v475 = vsel %vm473, 3e+38, %v417
        %v476 = vsel %vm472, 1, 0
        %v477 = vsel %vm473, 1, 0
        %v478 = vcvt.s32.f32 %v476
        %v479 = vcvt.s32.f32 %v477
        %v481 = vsel %vm431, %v478, 0
        %v484 = vsel %vm431, %v479, 0
        %486 = vmatprep.subr.mxu0 0.0
        %487 = vmatpush1.msra.mxu0 %v330
        %488 = vmatprep.subr.mxu0 0.0
        %489 = vmatpush1.msra.mxu0 %v331
        %490 = vmatprep.subr.mxu0 0.0
        %491 = vmatpush1.msra.mxu0 0.0
        %492 = vmatprep.subr.mxu0 0.0
        %493 = vmatpush1.msra.mxu0 0.0
        %494 = vmatprep.subr.mxu0 0.0
        %495 = vmatpush1.msra.mxu0 0.0
        %496 = vmatprep.subr.mxu0 0.0
        %497 = vmatpush1.msra.mxu0 0.0
        %498 = vmatprep.subr.mxu0 0.0
        %499 = vmatpush1.msra.mxu0 0.0
        %500 = vmatprep.subr.mxu0 0.0
        %501 = vmatpush1.msra.mxu0 0.0
        %502 = vmatprep.subr.mxu0 0.0
        %503 = vmatpush1.msra.mxu0 0.0
        %504 = vmatprep.subr.mxu0 0.0
        %505 = vmatpush1.msra.mxu0 0.0
        %506 = vmatprep.subr.mxu0 0.0
        %507 = vmatpush1.msra.mxu0 0.0
        %508 = vmatprep.subr.mxu0 0.0
        %509 = vmatpush1.msra.mxu0 0.0
        %510 = vmatprep.subr.mxu0 0.0
        %511 = vmatpush1.msra.mxu0 0.0
        %512 = vmatprep.subr.mxu0 0.0
        %513 = vmatpush1.msra.mxu0 0.0
        %514 = vmatprep.subr.mxu0 0.0
        %515 = vmatpush1.msra.mxu0 0.0
        %516 = vmatprep.subr.mxu0 0.0
        %517 = vmatpush1.msra.mxu0 0.0
        %518 = vmatprep.subr.mxu0 0.0
        %519 = vmatpush1.msra.mxu0 0.0
        %520 = vmatprep.subr.mxu0 0.0
        %521 = vmatpush1.msra.mxu0 0.0
        %522 = vmatprep.subr.mxu0 0.0
        %523 = vmatpush1.msra.mxu0 0.0
        %524 = vmatprep.subr.mxu0 0.0
        %525 = vmatpush1.msra.mxu0 0.0
        %526 = vmatprep.subr.mxu0 0.0
        %527 = vmatpush1.msra.mxu0 0.0
        %528 = vmatprep.subr.mxu0 0.0
        %529 = vmatpush1.msra.mxu0 0.0
        %530 = vmatprep.subr.mxu0 0.0
        %531 = vmatpush1.msra.mxu0 0.0
        %532 = vmatprep.subr.mxu0 0.0
        %533 = vmatpush1.msra.mxu0 0.0
        %534 = vmatprep.subr.mxu0 0.0
        %535 = vmatpush1.msra.mxu0 0.0
        %536 = vmatprep.subr.mxu0 0.0
        %537 = vmatpush1.msra.mxu0 0.0
        %538 = vmatprep.subr.mxu0 0.0
        %539 = vmatpush1.msra.mxu0 0.0
        %540 = vmatprep.subr.mxu0 0.0
        %541 = vmatpush1.msra.mxu0 0.0
        %542 = vmatprep.subr.mxu0 0.0
        %543 = vmatpush1.msra.mxu0 0.0
        %544 = vmatprep.subr.mxu0 0.0
        %545 = vmatpush1.msra.mxu0 0.0
        %546 = vmatprep.subr.mxu0 0.0
        %547 = vmatpush1.msra.mxu0 0.0
        %548 = vmatprep.subr.mxu0 0.0
        %549 = vmatpush1.msra.mxu0 0.0
        %550 = vmatprep.mubr.f32.mxu0 0.0
        %551 = vmatmul.mubr.f32.gmra.mrb[0].mxu0 %v481
        %v552 = vpop.f32.mrb[0].mxu0
        %v553 = vadd.f32 0.0, %v552
        %v554 = vpop.f32.mrb[0].mxu0
        %555 = vmatprep.mubr.f32.mxu0 0.0
        %556 = vmatmul.mubr.f32.gmra.mrb[0].mxu0 %v484
        %v557 = vpop.f32.mrb[0].mxu0
        %v558 = vadd.f32 0.0, %v557
        %v559 = vpop.f32.mrb[0].mxu0
        %560 = vdwg.mxu0
        %v561 = vlaneseq
        %v562 = vshrl.u32 %v561, 7
        %v563 = vsub.s32 0, %v562
        %v564 = vrot.slane %v425, %v563
        %vm565 = vcmask 23552
        %v567 = vsel %vm565, %v553, 0
        %v570 = vsel %vm565, %v558, 0
        %vm572 = vcmask 1042432
        %v574 = vsel %vm572, %v422, 0
        %576 = vmatprep.subr.mxu0 0.0
        %577 = vmatpush1.msra.mxu0 %v574
        %578 = vmatprep.subr.mxu0 0.0
        %579 = vmatpush1.msra.mxu0 0.0
        %580 = vmatprep.subr.mxu0 0.0
        %581 = vmatpush1.msra.mxu0 0.0
        %582 = vmatprep.subr.mxu0 0.0
        %583 = vmatpush1.msra.mxu0 0.0
        %584 = vmatprep.subr.mxu0 0.0
        %585 = vmatpush1.msra.mxu0 0.0
        %586 = vmatprep.subr.mxu0 0.0
        %587 = vmatpush1.msra.mxu0 0.0
        %588 = vmatprep.subr.mxu0 0.0
        %589 = vmatpush1.msra.mxu0 0.0
        %590 = vmatprep.subr.mxu0 0.0
        %591 = vmatpush1.msra.mxu0 0.0
        %592 = vmatprep.subr.mxu0 0.0
        %593 = vmatpush1.msra.mxu0 0.0
        %594 = vmatprep.subr.mxu0 0.0
        %595 = vmatpush1.msra.mxu0 0.0
        %596 = vmatprep.subr.mxu0 0.0
        %597 = vmatpush1.msra.mxu0 0.0
        %598 = vmatprep.subr.mxu0 0.0
        %599 = vmatpush1.msra.mxu0 0.0
        %600 = vmatprep.subr.mxu0 0.0
        %601 = vmatpush1.msra.mxu0 0.0
        %602 = vmatprep.subr.mxu0 0.0
        %603 = vmatpush1.msra.mxu0 0.0
        %604 = vmatprep.subr.mxu0 0.0
        %605 = vmatpush1.msra.mxu0 0.0
        %606 = vmatprep.subr.mxu0 0.0
        %607 = vmatpush1.msra.mxu0 0.0
        %608 = vmatprep.subr.mxu0 0.0
        %609 = vmatpush1.msra.mxu0 0.0
        %610 = vmatprep.subr.mxu0 0.0
        %611 = vmatpush1.msra.mxu0 0.0
        %612 = vmatprep.subr.mxu0 0.0
        %613 = vmatpush1.msra.mxu0 0.0
        %614 = vmatprep.subr.mxu0 0.0
        %615 = vmatpush1.msra.mxu0 0.0
        %616 = vmatprep.subr.mxu0 0.0
        %617 = vmatpush1.msra.mxu0 0.0
        %618 = vmatprep.subr.mxu0 0.0
        %619 = vmatpush1.msra.mxu0 0.0
        %620 = vmatprep.subr.mxu0 0.0
        %621 = vmatpush1.msra.mxu0 0.0
        %622 = vmatprep.subr.mxu0 0.0
        %623 = vmatpush1.msra.mxu0 0.0
        %624 = vmatprep.subr.mxu0 0.0
        %625 = vmatpush1.msra.mxu0 0.0
        %626 = vmatprep.subr.mxu0 0.0
        %627 = vmatpush1.msra.mxu0 0.0
        %628 = vmatprep.subr.mxu0 0.0
        %629 = vmatpush1.msra.mxu0 0.0
        %630 = vmatprep.subr.mxu0 0.0
        %631 = vmatpush1.msra.mxu0 0.0
        %632 = vmatprep.subr.mxu0 0.0
        %633 = vmatpush1.msra.mxu0 0.0
        %634 = vmatprep.subr.mxu0 0.0
        %635 = vmatpush1.msra.mxu0 0.0
        %636 = vmatprep.subr.mxu0 0.0
        %637 = vmatpush1.msra.mxu0 0.0
        %638 = vmatprep.subr.mxu0 0.0
        %639 = vmatpush1.msra.mxu0 0.0
        %640 = vmatprep.mubr.f32.mxu0 0.0
        %641 = vmatmul.mubr.f32.gmra.mrb[0].mxu0 %v567
        %v642 = vpop.f32.mrb[0].mxu0
        %v643 = vadd.f32 %v564, %v642
        %v644 = vpop.f32.mrb[0].mxu0
        %645 = vmatprep.mubr.f32.mxu0 0.0
        %646 = vmatmul.mubr.f32.gmra.mrb[0].mxu0 %v570
        %v647 = vpop.f32.mrb[0].mxu0
        %v648 = vadd.f32 %v564, %v647
        %v649 = vpop.f32.mrb[0].mxu0
        %650 = vdwg.mxu0
        %v651 = vsub.f32 %v553, %v553
        %v652 = vsub.f32 %v558, %v558
        %v653 = vmul.f32 %v651, %v651
        %v654 = vmul.f32 %v652, %v652
        %v655 = vsel %vm565, %v653, 0.0
        %656 = vadd.xlane.f32.xlu0 %v655
        %v657 = vpop.xlane.xlu0 %656
        %v658 = vsel %vm565, %v654, 0.0
        %659 = vadd.xlane.f32.xlu0 %v658
        %v660 = vpop.xlane.xlu0 %659
        %v661 = vrsqrt.pop %v657
        %v662 = vmul.f32 %v657, %v661
        %vm663 = vcmp.eq.f32.partialorder %v657, inf
        %v664 = vsel %vm663, %v657, %v662
        %vm665 = vcmp.eq.f32.partialorder %v657, 0.0
        %v666 = vand.u32 %v657, 2147483648
        %v667 = vsel %vm665, %v666, %v664
        %v668 = vrsqrt.pop %v660
        %v669 = vmul.f32 %v660, %v668
        %vm670 = vcmp.eq.f32.partialorder %v660, inf
        %v671 = vsel %vm670, %v660, %v669
        %vm672 = vcmp.eq.f32.partialorder %v660, 0.0
        %v673 = vand.u32 %v660, 2147483648
        %v674 = vsel %vm672, %v673, %v671
        %v676 = vsel %vm572, %v423, 0
        %678 = vmatprep.subr.mxu0 0.0
        %679 = vmatpush1.msra.mxu0 %v676
        %680 = vmatprep.subr.mxu0 0.0
        %681 = vmatpush1.msra.mxu0 0.0
        %682 = vmatprep.subr.mxu0 0.0
        %683 = vmatpush1.msra.mxu0 0.0
        %684 = vmatprep.subr.mxu0 0.0
        %685 = vmatpush1.msra.mxu0 0.0
        %686 = vmatprep.subr.mxu0 0.0
        %687 = vmatpush1.msra.mxu0 0.0
        %688 = vmatprep.subr.mxu0 0.0
        %689 = vmatpush1.msra.mxu0 0.0
        %690 = vmatprep.subr.mxu0 0.0
        %691 = vmatpush1.msra.mxu0 0.0
        %692 = vmatprep.subr.mxu0 0.0
        %693 = vmatpush1.msra.mxu0 0.0
        %694 = vmatprep.subr.mxu0 0.0
        %695 = vmatpush1.msra.mxu0 0.0
        %696 = vmatprep.subr.mxu0 0.0
        %697 = vmatpush1.msra.mxu0 0.0
        %698 = vmatprep.subr.mxu0 0.0
        %699 = vmatpush1.msra.mxu0 0.0
        %700 = vmatprep.subr.mxu0 0.0
        %701 = vmatpush1.msra.mxu0 0.0
        %702 = vmatprep.subr.mxu0 0.0
        %703 = vmatpush1.msra.mxu0 0.0
        %704 = vmatprep.subr.mxu0 0.0
        %705 = vmatpush1.msra.mxu0 0.0
        %706 = vmatprep.subr.mxu0 0.0
        %707 = vmatpush1.msra.mxu0 0.0
        %708 = vmatprep.subr.mxu0 0.0
        %709 = vmatpush1.msra.mxu0 0.0
        %710 = vmatprep.subr.mxu0 0.0
        %711 = vmatpush1.msra.mxu0 0.0
        %712 = vmatprep.subr.mxu0 0.0
        %713 = vmatpush1.msra.mxu0 0.0
        %714 = vmatprep.subr.mxu0 0.0
        %715 = vmatpush1.msra.mxu0 0.0
        %716 = vmatprep.subr.mxu0 0.0
        %717 = vmatpush1.msra.mxu0 0.0
        %718 = vmatprep.subr.mxu0 0.0
        %719 = vmatpush1.msra.mxu0 0.0
        %720 = vmatprep.subr.mxu0 0.0
        %721 = vmatpush1.msra.mxu0 0.0
        %722 = vmatprep.subr.mxu0 0.0
        %723 = vmatpush1.msra.mxu0 0.0
        %724 = vmatprep.subr.mxu0 0.0
        %725 = vmatpush1.msra.mxu0 0.0
        %726 = vmatprep.subr.mxu0 0.0
        %727 = vmatpush1.msra.mxu0 0.0
        %728 = vmatprep.subr.mxu0 0.0
        %729 = vmatpush1.msra.mxu0 0.0
        %730 = vmatprep.subr.mxu0 0.0
        %731 = vmatpush1.msra.mxu0 0.0
        %732 = vmatprep.subr.mxu0 0.0
        %733 = vmatpush1.msra.mxu0 0.0
        %734 = vmatprep.subr.mxu0 0.0
        %735 = vmatpush1.msra.mxu0 0.0
        %736 = vmatprep.subr.mxu0 0.0
        %737 = vmatpush1.msra.mxu0 0.0
        %738 = vmatprep.subr.mxu0 0.0
        %739 = vmatpush1.msra.mxu0 0.0
        %740 = vmatprep.subr.mxu0 0.0
        %741 = vmatpush1.msra.mxu0 0.0
        %742 = vmatprep.mubr.f32.mxu0 0.0
        %743 = vmatmul.mubr.f32.gmra.mrb[0].mxu0 %v567
        %v744 = vpop.f32.mrb[0].mxu0
        %v745 = vadd.f32 0.0, %v744
        %v746 = vpop.f32.mrb[0].mxu0
        %747 = vmatprep.mubr.f32.mxu0 0.0
        %748 = vmatmul.mubr.f32.gmra.mrb[0].mxu0 %v570
        %v749 = vpop.f32.mrb[0].mxu0
        %v750 = vadd.f32 0.0, %v749
        %v751 = vpop.f32.mrb[0].mxu0
        %752 = vdwg.mxu0
        %v753 = vadd.f32 %v643, %v745
        %v754 = vadd.f32 %v648, %v750
        %v755 = vlaneseq
        %v756 = vshrl.u32 %v755, 7
        %v757 = vsub.s32 0, %v756
        %v758 = vrot.slane %v424, %v757
        %v759 = vmul.f32 %v667, %v758
        %v760 = vmul.f32 %v674, %v758
        %v761 = vadd.f32 %v753, %v759
        %v762 = vadd.f32 %v754, %v760
        %vm763 = vcmp.gt.f32.partialorder %v761, 0.0
        %vm764 = vcmp.gt.f32.partialorder %v762, 0.0
        %v765 = vmul.f32 %v761, 0.2
        %v766 = vmul.f32 %v762, 0.2
        %v767 = vsel %vm763, %v761, %v765
        %v768 = vsel %vm764, %v762, %v766
        %v769 = vlaneseq
        %v770 = vshrl.u32 %v769, 7
        %v771 = vsub.s32 0, %v770
        %v772 = vrot.slane %v428, %v771
        %vm773 = vcmask 80896
        %v775 = vsel %vm773, %v767, 0
        %v778 = vsel %vm773, %v768, 0
        %vm780 = vcmask 1041408
        %v782 = vsel %vm780, %v427, 0
        %784 = vmatprep.subr.mxu0 0.0
        %785 = vmatpush1.msra.mxu0 %v426
        %786 = vmatprep.subr.mxu0 0.0
        %787 = vmatpush1.msra.mxu0 %v782
        %788 = vmatprep.subr.mxu0 0.0
        %789 = vmatpush1.msra.mxu0 0.0
        %790 = vmatprep.subr.mxu0 0.0
        %791 = vmatpush1.msra.mxu0 0.0
        %792 = vmatprep.subr.mxu0 0.0
        %793 = vmatpush1.msra.mxu0 0.0
        %794 = vmatprep.subr.mxu0 0.0
        %795 = vmatpush1.msra.mxu0 0.0
        %796 = vmatprep.subr.mxu0 0.0
        %797 = vmatpush1.msra.mxu0 0.0
        %798 = vmatprep.subr.mxu0 0.0
        %799 = vmatpush1.msra.mxu0 0.0
        %800 = vmatprep.subr.mxu0 0.0
        %801 = vmatpush1.msra.mxu0 0.0
        %802 = vmatprep.subr.mxu0 0.0
        %803 = vmatpush1.msra.mxu0 0.0
        %804 = vmatprep.subr.mxu0 0.0
        %805 = vmatpush1.msra.mxu0 0.0
        %806 = vmatprep.subr.mxu0 0.0
        %807 = vmatpush1.msra.mxu0 0.0
        %808 = vmatprep.subr.mxu0 0.0
        %809 = vmatpush1.msra.mxu0 0.0
        %810 = vmatprep.subr.mxu0 0.0
        %811 = vmatpush1.msra.mxu0 0.0
        %812 = vmatprep.subr.mxu0 0.0
        %813 = vmatpush1.msra.mxu0 0.0
        %814 = vmatprep.subr.mxu0 0.0
        %815 = vmatpush1.msra.mxu0 0.0
        %816 = vmatprep.subr.mxu0 0.0
        %817 = vmatpush1.msra.mxu0 0.0
        %818 = vmatprep.subr.mxu0 0.0
        %819 = vmatpush1.msra.mxu0 0.0
        %820 = vmatprep.subr.mxu0 0.0
        %821 = vmatpush1.msra.mxu0 0.0
        %822 = vmatprep.subr.mxu0 0.0
        %823 = vmatpush1.msra.mxu0 0.0
        %824 = vmatprep.subr.mxu0 0.0
        %825 = vmatpush1.msra.mxu0 0.0
        %826 = vmatprep.subr.mxu0 0.0
        %827 = vmatpush1.msra.mxu0 0.0
        %828 = vmatprep.subr.mxu0 0.0
        %829 = vmatpush1.msra.mxu0 0.0
        %830 = vmatprep.subr.mxu0 0.0
        %831 = vmatpush1.msra.mxu0 0.0
        %832 = vmatprep.subr.mxu0 0.0
        %833 = vmatpush1.msra.mxu0 0.0
        %834 = vmatprep.subr.mxu0 0.0
        %835 = vmatpush1.msra.mxu0 0.0
        %836 = vmatprep.subr.mxu0 0.0
        %837 = vmatpush1.msra.mxu0 0.0
        %838 = vmatprep.subr.mxu0 0.0
        %839 = vmatpush1.msra.mxu0 0.0
        %840 = vmatprep.subr.mxu0 0.0
        %841 = vmatpush1.msra.mxu0 0.0
        %842 = vmatprep.subr.mxu0 0.0
        %843 = vmatpush1.msra.mxu0 0.0
        %844 = vmatprep.subr.mxu0 0.0
        %845 = vmatpush1.msra.mxu0 0.0
        %846 = vmatprep.subr.mxu0 0.0
        %847 = vmatpush1.msra.mxu0 0.0
        %848 = vmatprep.mubr.f32.mxu0 0.0
        %849 = vmatmul.mubr.f32.gmra.mrb[0].mxu0 %v775
        %v850 = vpop.f32.mrb[0].mxu0
        %v851 = vadd.f32 %v772, %v850
        %v852 = vpop.f32.mrb[0].mxu0
        %853 = vmatprep.mubr.f32.mxu0 0.0
        %854 = vmatmul.mubr.f32.gmra.mrb[0].mxu0 %v778
        %v855 = vpop.f32.mrb[0].mxu0
        %v856 = vadd.f32 %v772, %v855
        %v857 = vpop.f32.mrb[0].mxu0
        %858 = vdwg.mxu0
        %vm859 = vcmp.gt.f32.partialorder %v851, 0.0
        %vm860 = vcmp.gt.f32.partialorder %v856, 0.0
        %v861 = vmul.f32 %v851, 0.2
        %v862 = vmul.f32 %v856, 0.2
        %v863 = vsel %vm859, %v851, %v861
        %v864 = vsel %vm860, %v856, %v862
        %v865 = vlaneseq
        %v866 = vshrl.u32 %v865, 7
        %v867 = vsub.s32 0, %v866
        %v868 = vrot.slane %v429, %v867
        %v869 = vmul.f32 %v863, %v868
        %v870 = vmul.f32 %v864, %v868
        %v871 = vsel %vm773, %v869, 0.0
        %872 = vadd.xlane.f32.xlu0 %v871
        %v873 = vpop.xlane.xlu0 %872
        %v874 = vsel %vm773, %v870, 0.0
        %875 = vadd.xlane.f32.xlu0 %v874
        %v876 = vpop.xlane.xlu0 %875
        %v877 = vlaneseq
        %v878 = vshrl.u32 %v877, 7
        %v879 = vsub.s32 0, %v878
        %v880 = vrot.slane %v430, %v879
        %v881 = vadd.f32 %v873, %v880
        %v882 = vadd.f32 %v876, %v880
        %884 = vset.pattern.permute.xlu0 0
        %885 = vperm.xlu0 %884, %v881
        %v886 = vpop.permute.xlu0 %885
        %889 = vset.pattern.permute.xlu0 0
        %890 = vperm.xlu0 %889, %v882
        %v891 = vpop.permute.xlu0 %890
        %v893 = vsel %vm472, %v886, 0.0
        %v894 = vsel %vm473, %v891, 0.0
        %v895 = vsel %vm431, %v474, inf
        %896 = vmin.xlane.f32.xlu0 %v895
        %v897 = vpop.xlane.xlu0 %896
        %v898 = vsel %vm431, %v475, inf
        %899 = vmin.xlane.f32.xlu0 %v898
        %v900 = vpop.xlane.xlu0 %899
        %vm901 = vcmp.le.f32.partialorder %v474, %v897
        %vm902 = vcmp.le.f32.partialorder %v475, %v900
        %v903 = vsel %vm901, %v421, 16
        %v904 = vsel %vm902, %v421, 16
        %v905 = vsel %vm431, %v903, 2147483647
        %v906 = vand.u32 %v905, 65535
        %v907 = vshra.s32 %v905, 16
        %v908 = vcvt.s32.f32 %v906
        %v909 = vcvt.s32.f32 %v907
        %910 = vmin.xlane.f32.xlu0 %v909
        %v911 = vpop.xlane.xlu0 %910
        %vm912 = vcmp.eq.f32.partialorder %v909, %v911
        %v913 = vsel %vm912, %v908, inf
        %914 = vmin.xlane.f32.xlu0 %v913
        %v915 = vpop.xlane.xlu0 %914
        %v916 = vcvt.f32.s32 %v915
        %v917 = vcvt.f32.s32 %v911
        %v918 = vshll.u32 %v917, 16
        %v919 = vadd.s32 %v918, %v916
        %v920 = vsel %vm431, %v904, 2147483647
        %v921 = vand.u32 %v920, 65535
        %v922 = vshra.s32 %v920, 16
        %v923 = vcvt.s32.f32 %v921
        %v924 = vcvt.s32.f32 %v922
        %925 = vmin.xlane.f32.xlu0 %v924
        %v926 = vpop.xlane.xlu0 %925
        %vm927 = vcmp.eq.f32.partialorder %v924, %v926
        %v928 = vsel %vm927, %v923, inf
        %929 = vmin.xlane.f32.xlu0 %v928
        %v930 = vpop.xlane.xlu0 %929
        %v931 = vcvt.f32.s32 %v930
        %v932 = vcvt.f32.s32 %v926
        %v933 = vshll.u32 %v932, 16
        %v934 = vadd.s32 %v933, %v931
        %vm935 = vcmp.eq.s32.totalorder %v421, %v919
        %vm936 = vcmp.eq.s32.totalorder %v421, %v934
        %v937 = vsel %vm935, 3e+38, %v474
        %v938 = vsel %vm936, 3e+38, %v475
        %v939 = vsel %vm935, 1, 0
        %v940 = vsel %vm936, 1, 0
        %v941 = vcvt.s32.f32 %v939
        %v942 = vcvt.s32.f32 %v940
        %v944 = vsel %vm431, %v941, 0
        %v947 = vsel %vm431, %v942, 0
        %949 = vmatprep.subr.mxu0 0.0
        %950 = vmatpush1.msra.mxu0 %v330
        %951 = vmatprep.subr.mxu0 0.0
        %952 = vmatpush1.msra.mxu0 %v331
        %953 = vmatprep.subr.mxu0 0.0
        %954 = vmatpush1.msra.mxu0 0.0
        %955 = vmatprep.subr.mxu0 0.0
        %956 = vmatpush1.msra.mxu0 0.0
        %957 = vmatprep.subr.mxu0 0.0
        %958 = vmatpush1.msra.mxu0 0.0
        %959 = vmatprep.subr.mxu0 0.0
        %960 = vmatpush1.msra.mxu0 0.0
        %961 = vmatprep.subr.mxu0 0.0
        %962 = vmatpush1.msra.mxu0 0.0
        %963 = vmatprep.subr.mxu0 0.0
        %964 = vmatpush1.msra.mxu0 0.0
        %965 = vmatprep.subr.mxu0 0.0
        %966 = vmatpush1.msra.mxu0 0.0
        %967 = vmatprep.subr.mxu0 0.0
        %968 = vmatpush1.msra.mxu0 0.0
        %969 = vmatprep.subr.mxu0 0.0
        %970 = vmatpush1.msra.mxu0 0.0
        %971 = vmatprep.subr.mxu0 0.0
        %972 = vmatpush1.msra.mxu0 0.0
        %973 = vmatprep.subr.mxu0 0.0
        %974 = vmatpush1.msra.mxu0 0.0
        %975 = vmatprep.subr.mxu0 0.0
        %976 = vmatpush1.msra.mxu0 0.0
        %977 = vmatprep.subr.mxu0 0.0
        %978 = vmatpush1.msra.mxu0 0.0
        %979 = vmatprep.subr.mxu0 0.0
        %980 = vmatpush1.msra.mxu0 0.0
        %981 = vmatprep.subr.mxu0 0.0
        %982 = vmatpush1.msra.mxu0 0.0
        %983 = vmatprep.subr.mxu0 0.0
        %984 = vmatpush1.msra.mxu0 0.0
        %985 = vmatprep.subr.mxu0 0.0
        %986 = vmatpush1.msra.mxu0 0.0
        %987 = vmatprep.subr.mxu0 0.0
        %988 = vmatpush1.msra.mxu0 0.0
        %989 = vmatprep.subr.mxu0 0.0
        %990 = vmatpush1.msra.mxu0 0.0
        %991 = vmatprep.subr.mxu0 0.0
        %992 = vmatpush1.msra.mxu0 0.0
        %993 = vmatprep.subr.mxu0 0.0
        %994 = vmatpush1.msra.mxu0 0.0
        %995 = vmatprep.subr.mxu0 0.0
        %996 = vmatpush1.msra.mxu0 0.0
        %997 = vmatprep.subr.mxu0 0.0
        %998 = vmatpush1.msra.mxu0 0.0
        %999 = vmatprep.subr.mxu0 0.0
        %1000 = vmatpush1.msra.mxu0 0.0
        %1001 = vmatprep.subr.mxu0 0.0
        %1002 = vmatpush1.msra.mxu0 0.0
        %1003 = vmatprep.subr.mxu0 0.0
        %1004 = vmatpush1.msra.mxu0 0.0
        %1005 = vmatprep.subr.mxu0 0.0
        %1006 = vmatpush1.msra.mxu0 0.0
        %1007 = vmatprep.subr.mxu0 0.0
        %1008 = vmatpush1.msra.mxu0 0.0
        %1009 = vmatprep.subr.mxu0 0.0
        %1010 = vmatpush1.msra.mxu0 0.0
        %1011 = vmatprep.subr.mxu0 0.0
        %1012 = vmatpush1.msra.mxu0 0.0
        %1013 = vmatprep.mubr.f32.mxu0 0.0
        %1014 = vmatmul.mubr.f32.gmra.mrb[0].mxu0 %v944
        %v1015 = vpop.f32.mrb[0].mxu0
        %v1016 = vadd.f32 0.0, %v1015
        %v1017 = vpop.f32.mrb[0].mxu0
        %1018 = vmatprep.mubr.f32.mxu0 0.0
        %1019 = vmatmul.mubr.f32.gmra.mrb[0].mxu0 %v947
        %v1020 = vpop.f32.mrb[0].mxu0
        %v1021 = vadd.f32 0.0, %v1020
        %v1022 = vpop.f32.mrb[0].mxu0
        %1023 = vdwg.mxu0
        %v1024 = vsub.f32 %v553, %v1016
        %v1025 = vsub.f32 %v558, %v1021
        %v1026 = vmul.f32 %v1024, %v1024
        %v1027 = vmul.f32 %v1025, %v1025
        %v1028 = vsel %vm565, %v1026, 0.0
        %1029 = vadd.xlane.f32.xlu0 %v1028
        %v1030 = vpop.xlane.xlu0 %1029
        %v1031 = vsel %vm565, %v1027, 0.0
        %1032 = vadd.xlane.f32.xlu0 %v1031
        %v1033 = vpop.xlane.xlu0 %1032
        %v1034 = vrsqrt.pop %v1030
        %v1035 = vmul.f32 %v1030, %v1034
        %vm1036 = vcmp.eq.f32.partialorder %v1030, inf
        %v1037 = vsel %vm1036, %v1030, %v1035
        %vm1038 = vcmp.eq.f32.partialorder %v1030, 0.0
        %v1039 = vand.u32 %v1030, 2147483648
        %v1040 = vsel %vm1038, %v1039, %v1037
        %v1041 = vrsqrt.pop %v1033
        %v1042 = vmul.f32 %v1033, %v1041
        %vm1043 = vcmp.eq.f32.partialorder %v1033, inf
        %v1044 = vsel %vm1043, %v1033, %v1042
        %vm1045 = vcmp.eq.f32.partialorder %v1033, 0.0
        %v1046 = vand.u32 %v1033, 2147483648
        %v1047 = vsel %vm1045, %v1046, %v1044
        %v1049 = vsel %vm565, %v1016, 0
        %v1052 = vsel %vm565, %v1021, 0
        %1054 = vmatprep.subr.mxu0 0.0
        %1055 = vmatpush1.msra.mxu0 %v676
        %1056 = vmatprep.subr.mxu0 0.0
        %1057 = vmatpush1.msra.mxu0 0.0
        %1058 = vmatprep.subr.mxu0 0.0
        %1059 = vmatpush1.msra.mxu0 0.0
        %1060 = vmatprep.subr.mxu0 0.0
        %1061 = vmatpush1.msra.mxu0 0.0
        %1062 = vmatprep.subr.mxu0 0.0
        %1063 = vmatpush1.msra.mxu0 0.0
        %1064 = vmatprep.subr.mxu0 0.0
        %1065 = vmatpush1.msra.mxu0 0.0
        %1066 = vmatprep.subr.mxu0 0.0
        %1067 = vmatpush1.msra.mxu0 0.0
        %1068 = vmatprep.subr.mxu0 0.0
        %1069 = vmatpush1.msra.mxu0 0.0
        %1070 = vmatprep.subr.mxu0 0.0
        %1071 = vmatpush1.msra.mxu0 0.0
        %1072 = vmatprep.subr.mxu0 0.0
        %1073 = vmatpush1.msra.mxu0 0.0
        %1074 = vmatprep.subr.mxu0 0.0
        %1075 = vmatpush1.msra.mxu0 0.0
        %1076 = vmatprep.subr.mxu0 0.0
        %1077 = vmatpush1.msra.mxu0 0.0
        %1078 = vmatprep.subr.mxu0 0.0
        %1079 = vmatpush1.msra.mxu0 0.0
        %1080 = vmatprep.subr.mxu0 0.0
        %1081 = vmatpush1.msra.mxu0 0.0
        %1082 = vmatprep.subr.mxu0 0.0
        %1083 = vmatpush1.msra.mxu0 0.0
        %1084 = vmatprep.subr.mxu0 0.0
        %1085 = vmatpush1.msra.mxu0 0.0
        %1086 = vmatprep.subr.mxu0 0.0
        %1087 = vmatpush1.msra.mxu0 0.0
        %1088 = vmatprep.subr.mxu0 0.0
        %1089 = vmatpush1.msra.mxu0 0.0
        %1090 = vmatprep.subr.mxu0 0.0
        %1091 = vmatpush1.msra.mxu0 0.0
        %1092 = vmatprep.subr.mxu0 0.0
        %1093 = vmatpush1.msra.mxu0 0.0
        %1094 = vmatprep.subr.mxu0 0.0
        %1095 = vmatpush1.msra.mxu0 0.0
        %1096 = vmatprep.subr.mxu0 0.0
        %1097 = vmatpush1.msra.mxu0 0.0
        %1098 = vmatprep.subr.mxu0 0.0
        %1099 = vmatpush1.msra.mxu0 0.0
        %1100 = vmatprep.subr.mxu0 0.0
        %1101 = vmatpush1.msra.mxu0 0.0
        %1102 = vmatprep.subr.mxu0 0.0
        %1103 = vmatpush1.msra.mxu0 0.0
        %1104 = vmatprep.subr.mxu0 0.0
        %1105 = vmatpush1.msra.mxu0 0.0
        %1106 = vmatprep.subr.mxu0 0.0
        %1107 = vmatpush1.msra.mxu0 0.0
        %1108 = vmatprep.subr.mxu0 0.0
        %1109 = vmatpush1.msra.mxu0 0.0
        %1110 = vmatprep.subr.mxu0 0.0
        %1111 = vmatpush1.msra.mxu0 0.0
        %1112 = vmatprep.subr.mxu0 0.0
        %1113 = vmatpush1.msra.mxu0 0.0
        %1114 = vmatprep.subr.mxu0 0.0
        %1115 = vmatpush1.msra.mxu0 0.0
        %1116 = vmatprep.subr.mxu0 0.0
        %1117 = vmatpush1.msra.mxu0 0.0
        %1118 = vmatprep.mubr.f32.mxu0 0.0
        %1119 = vmatmul.mubr.f32.gmra.mrb[0].mxu0 %v1049
        %v1120 = vpop.f32.mrb[0].mxu0
        %v1121 = vadd.f32 0.0, %v1120
        %v1122 = vpop.f32.mrb[0].mxu0
        %1123 = vmatprep.mubr.f32.mxu0 0.0
        %1124 = vmatmul.mubr.f32.gmra.mrb[0].mxu0 %v1052
        %v1125 = vpop.f32.mrb[0].mxu0
        %v1126 = vadd.f32 0.0, %v1125
        %v1127 = vpop.f32.mrb[0].mxu0
        %1128 = vdwg.mxu0
        %v1129 = vadd.f32 %v643, %v1121
        %v1130 = vadd.f32 %v648, %v1126
        %v1131 = vmul.f32 %v1040, %v758
        %v1132 = vmul.f32 %v1047, %v758
        %v1133 = vadd.f32 %v1129, %v1131
        %v1134 = vadd.f32 %v1130, %v1132
        %vm1135 = vcmp.gt.f32.partialorder %v1133, 0.0
        %vm1136 = vcmp.gt.f32.partialorder %v1134, 0.0
        %v1137 = vmul.f32 %v1133, 0.2
        %v1138 = vmul.f32 %v1134, 0.2
        %v1139 = vsel %vm1135, %v1133, %v1137
        %v1140 = vsel %vm1136, %v1134, %v1138
        %v1142 = vsel %vm773, %v1139, 0
        %v1145 = vsel %vm773, %v1140, 0
        %1147 = vmatprep.subr.mxu0 0.0
        %1148 = vmatpush1.msra.mxu0 %v426
        %1149 = vmatprep.subr.mxu0 0.0
        %1150 = vmatpush1.msra.mxu0 %v782
        %1151 = vmatprep.subr.mxu0 0.0
        %1152 = vmatpush1.msra.mxu0 0.0
        %1153 = vmatprep.subr.mxu0 0.0
        %1154 = vmatpush1.msra.mxu0 0.0
        %1155 = vmatprep.subr.mxu0 0.0
        %1156 = vmatpush1.msra.mxu0 0.0
        %1157 = vmatprep.subr.mxu0 0.0
        %1158 = vmatpush1.msra.mxu0 0.0
        %1159 = vmatprep.subr.mxu0 0.0
        %1160 = vmatpush1.msra.mxu0 0.0
        %1161 = vmatprep.subr.mxu0 0.0
        %1162 = vmatpush1.msra.mxu0 0.0
        %1163 = vmatprep.subr.mxu0 0.0
        %1164 = vmatpush1.msra.mxu0 0.0
        %1165 = vmatprep.subr.mxu0 0.0
        %1166 = vmatpush1.msra.mxu0 0.0
        %1167 = vmatprep.subr.mxu0 0.0
        %1168 = vmatpush1.msra.mxu0 0.0
        %1169 = vmatprep.subr.mxu0 0.0
        %1170 = vmatpush1.msra.mxu0 0.0
        %1171 = vmatprep.subr.mxu0 0.0
        %1172 = vmatpush1.msra.mxu0 0.0
        %1173 = vmatprep.subr.mxu0 0.0
        %1174 = vmatpush1.msra.mxu0 0.0
        %1175 = vmatprep.subr.mxu0 0.0
        %1176 = vmatpush1.msra.mxu0 0.0
        %1177 = vmatprep.subr.mxu0 0.0
        %1178 = vmatpush1.msra.mxu0 0.0
        %1179 = vmatprep.subr.mxu0 0.0
        %1180 = vmatpush1.msra.mxu0 0.0
        %1181 = vmatprep.subr.mxu0 0.0
        %1182 = vmatpush1.msra.mxu0 0.0
        %1183 = vmatprep.subr.mxu0 0.0
        %1184 = vmatpush1.msra.mxu0 0.0
        %1185 = vmatprep.subr.mxu0 0.0
        %1186 = vmatpush1.msra.mxu0 0.0
        %1187 = vmatprep.subr.mxu0 0.0
        %1188 = vmatpush1.msra.mxu0 0.0
        %1189 = vmatprep.subr.mxu0 0.0
        %1190 = vmatpush1.msra.mxu0 0.0
        %1191 = vmatprep.subr.mxu0 0.0
        %1192 = vmatpush1.msra.mxu0 0.0
        %1193 = vmatprep.subr.mxu0 0.0
        %1194 = vmatpush1.msra.mxu0 0.0
        %1195 = vmatprep.subr.mxu0 0.0
        %1196 = vmatpush1.msra.mxu0 0.0
        %1197 = vmatprep.subr.mxu0 0.0
        %1198 = vmatpush1.msra.mxu0 0.0
        %1199 = vmatprep.subr.mxu0 0.0
        %1200 = vmatpush1.msra.mxu0 0.0
        %1201 = vmatprep.subr.mxu0 0.0
        %1202 = vmatpush1.msra.mxu0 0.0
        %1203 = vmatprep.subr.mxu0 0.0
        %1204 = vmatpush1.msra.mxu0 0.0
        %1205 = vmatprep.subr.mxu0 0.0
        %1206 = vmatpush1.msra.mxu0 0.0
        %1207 = vmatprep.subr.mxu0 0.0
        %1208 = vmatpush1.msra.mxu0 0.0
        %1209 = vmatprep.subr.mxu0 0.0
        %1210 = vmatpush1.msra.mxu0 0.0
        %1211 = vmatprep.mubr.f32.mxu0 0.0
        %1212 = vmatmul.mubr.f32.gmra.mrb[0].mxu0 %v1142
        %v1213 = vpop.f32.mrb[0].mxu0
        %v1214 = vadd.f32 %v772, %v1213
        %v1215 = vpop.f32.mrb[0].mxu0
        %1216 = vmatprep.mubr.f32.mxu0 0.0
        %1217 = vmatmul.mubr.f32.gmra.mrb[0].mxu0 %v1145
        %v1218 = vpop.f32.mrb[0].mxu0
        %v1219 = vadd.f32 %v772, %v1218
        %v1220 = vpop.f32.mrb[0].mxu0
        %1221 = vdwg.mxu0
        %vm1222 = vcmp.gt.f32.partialorder %v1214, 0.0
        %vm1223 = vcmp.gt.f32.partialorder %v1219, 0.0
        %v1224 = vmul.f32 %v1214, 0.2
        %v1225 = vmul.f32 %v1219, 0.2
        %v1226 = vsel %vm1222, %v1214, %v1224
        %v1227 = vsel %vm1223, %v1219, %v1225
        %v1228 = vmul.f32 %v1226, %v868
        %v1229 = vmul.f32 %v1227, %v868
        %v1230 = vsel %vm773, %v1228, 0.0
        %1231 = vadd.xlane.f32.xlu0 %v1230
        %v1232 = vpop.xlane.xlu0 %1231
        %v1233 = vsel %vm773, %v1229, 0.0
        %1234 = vadd.xlane.f32.xlu0 %v1233
        %v1235 = vpop.xlane.xlu0 %1234
        %v1236 = vadd.f32 %v1232, %v880
        %v1237 = vadd.f32 %v1235, %v880
        %1239 = vset.pattern.permute.xlu0 0
        %1240 = vperm.xlu0 %1239, %v1236
        %v1241 = vpop.permute.xlu0 %1240
        %1244 = vset.pattern.permute.xlu0 0
        %1245 = vperm.xlu0 %1244, %v1237
        %v1246 = vpop.permute.xlu0 %1245
        %v1248 = vsel %vm935, %v1241, %v893
        %v1249 = vsel %vm936, %v1246, %v894
        %v1250 = vsel %vm431, %v937, inf
        %1251 = vmin.xlane.f32.xlu0 %v1250
        %v1252 = vpop.xlane.xlu0 %1251
        %v1253 = vsel %vm431, %v938, inf
        %1254 = vmin.xlane.f32.xlu0 %v1253
        %v1255 = vpop.xlane.xlu0 %1254
        %vm1256 = vcmp.le.f32.partialorder %v937, %v1252
        %vm1257 = vcmp.le.f32.partialorder %v938, %v1255
        %v1258 = vsel %vm1256, %v421, 16
        %v1259 = vsel %vm1257, %v421, 16
        %v1260 = vsel %vm431, %v1258, 2147483647
        %v1261 = vand.u32 %v1260, 65535
        %v1262 = vshra.s32 %v1260, 16
        %v1263 = vcvt.s32.f32 %v1261
        %v1264 = vcvt.s32.f32 %v1262
        %1265 = vmin.xlane.f32.xlu0 %v1264
        %v1266 = vpop.xlane.xlu0 %1265
        %vm1267 = vcmp.eq.f32.partialorder %v1264, %v1266
        %v1268 = vsel %vm1267, %v1263, inf
        %1269 = vmin.xlane.f32.xlu0 %v1268
        %v1270 = vpop.xlane.xlu0 %1269
        %v1271 = vcvt.f32.s32 %v1270
        %v1272 = vcvt.f32.s32 %v1266
        %v1273 = vshll.u32 %v1272, 16
        %v1274 = vadd.s32 %v1273, %v1271
        %v1275 = vsel %vm431, %v1259, 2147483647
        %v1276 = vand.u32 %v1275, 65535
        %v1277 = vshra.s32 %v1275, 16
        %v1278 = vcvt.s32.f32 %v1276
        %v1279 = vcvt.s32.f32 %v1277
        %1280 = vmin.xlane.f32.xlu0 %v1279
        %v1281 = vpop.xlane.xlu0 %1280
        %vm1282 = vcmp.eq.f32.partialorder %v1279, %v1281
        %v1283 = vsel %vm1282, %v1278, inf
        %1284 = vmin.xlane.f32.xlu0 %v1283
        %v1285 = vpop.xlane.xlu0 %1284
        %v1286 = vcvt.f32.s32 %v1285
        %v1287 = vcvt.f32.s32 %v1281
        %v1288 = vshll.u32 %v1287, 16
        %v1289 = vadd.s32 %v1288, %v1286
        %vm1290 = vcmp.eq.s32.totalorder %v421, %v1274
        %vm1291 = vcmp.eq.s32.totalorder %v421, %v1289
        %v1292 = vsel %vm1290, 3e+38, %v937
        %v1293 = vsel %vm1291, 3e+38, %v938
        %v1294 = vsel %vm1290, 1, 0
        %v1295 = vsel %vm1291, 1, 0
        %v1296 = vcvt.s32.f32 %v1294
        %v1297 = vcvt.s32.f32 %v1295
        %v1299 = vsel %vm431, %v1296, 0
        %v1302 = vsel %vm431, %v1297, 0
        %1304 = vmatprep.subr.mxu0 0.0
        %1305 = vmatpush1.msra.mxu0 %v330
        %1306 = vmatprep.subr.mxu0 0.0
        %1307 = vmatpush1.msra.mxu0 %v331
        %1308 = vmatprep.subr.mxu0 0.0
        %1309 = vmatpush1.msra.mxu0 0.0
        %1310 = vmatprep.subr.mxu0 0.0
        %1311 = vmatpush1.msra.mxu0 0.0
        %1312 = vmatprep.subr.mxu0 0.0
        %1313 = vmatpush1.msra.mxu0 0.0
        %1314 = vmatprep.subr.mxu0 0.0
        %1315 = vmatpush1.msra.mxu0 0.0
        %1316 = vmatprep.subr.mxu0 0.0
        %1317 = vmatpush1.msra.mxu0 0.0
        %1318 = vmatprep.subr.mxu0 0.0
        %1319 = vmatpush1.msra.mxu0 0.0
        %1320 = vmatprep.subr.mxu0 0.0
        %1321 = vmatpush1.msra.mxu0 0.0
        %1322 = vmatprep.subr.mxu0 0.0
        %1323 = vmatpush1.msra.mxu0 0.0
        %1324 = vmatprep.subr.mxu0 0.0
        %1325 = vmatpush1.msra.mxu0 0.0
        %1326 = vmatprep.subr.mxu0 0.0
        %1327 = vmatpush1.msra.mxu0 0.0
        %1328 = vmatprep.subr.mxu0 0.0
        %1329 = vmatpush1.msra.mxu0 0.0
        %1330 = vmatprep.subr.mxu0 0.0
        %1331 = vmatpush1.msra.mxu0 0.0
        %1332 = vmatprep.subr.mxu0 0.0
        %1333 = vmatpush1.msra.mxu0 0.0
        %1334 = vmatprep.subr.mxu0 0.0
        %1335 = vmatpush1.msra.mxu0 0.0
        %1336 = vmatprep.subr.mxu0 0.0
        %1337 = vmatpush1.msra.mxu0 0.0
        %1338 = vmatprep.subr.mxu0 0.0
        %1339 = vmatpush1.msra.mxu0 0.0
        %1340 = vmatprep.subr.mxu0 0.0
        %1341 = vmatpush1.msra.mxu0 0.0
        %1342 = vmatprep.subr.mxu0 0.0
        %1343 = vmatpush1.msra.mxu0 0.0
        %1344 = vmatprep.subr.mxu0 0.0
        %1345 = vmatpush1.msra.mxu0 0.0
        %1346 = vmatprep.subr.mxu0 0.0
        %1347 = vmatpush1.msra.mxu0 0.0
        %1348 = vmatprep.subr.mxu0 0.0
        %1349 = vmatpush1.msra.mxu0 0.0
        %1350 = vmatprep.subr.mxu0 0.0
        %1351 = vmatpush1.msra.mxu0 0.0
        %1352 = vmatprep.subr.mxu0 0.0
        %1353 = vmatpush1.msra.mxu0 0.0
        %1354 = vmatprep.subr.mxu0 0.0
        %1355 = vmatpush1.msra.mxu0 0.0
        %1356 = vmatprep.subr.mxu0 0.0
        %1357 = vmatpush1.msra.mxu0 0.0
        %1358 = vmatprep.subr.mxu0 0.0
        %1359 = vmatpush1.msra.mxu0 0.0
        %1360 = vmatprep.subr.mxu0 0.0
        %1361 = vmatpush1.msra.mxu0 0.0
        %1362 = vmatprep.subr.mxu0 0.0
        %1363 = vmatpush1.msra.mxu0 0.0
        %1364 = vmatprep.subr.mxu0 0.0
        %1365 = vmatpush1.msra.mxu0 0.0
        %1366 = vmatprep.subr.mxu0 0.0
        %1367 = vmatpush1.msra.mxu0 0.0
        %1368 = vmatprep.mubr.f32.mxu0 0.0
        %1369 = vmatmul.mubr.f32.gmra.mrb[0].mxu0 %v1299
        %v1370 = vpop.f32.mrb[0].mxu0
        %v1371 = vadd.f32 0.0, %v1370
        %v1372 = vpop.f32.mrb[0].mxu0
        %1373 = vmatprep.mubr.f32.mxu0 0.0
        %1374 = vmatmul.mubr.f32.gmra.mrb[0].mxu0 %v1302
        %v1375 = vpop.f32.mrb[0].mxu0
        %v1376 = vadd.f32 0.0, %v1375
        %v1377 = vpop.f32.mrb[0].mxu0
        %1378 = vdwg.mxu0
        %v1379 = vsub.f32 %v553, %v1371
        %v1380 = vsub.f32 %v558, %v1376
        %v1381 = vmul.f32 %v1379, %v1379
        %v1382 = vmul.f32 %v1380, %v1380
        %v1383 = vsel %vm565, %v1381, 0.0
        %1384 = vadd.xlane.f32.xlu0 %v1383
        %v1385 = vpop.xlane.xlu0 %1384
        %v1386 = vsel %vm565, %v1382, 0.0
        %1387 = vadd.xlane.f32.xlu0 %v1386
        %v1388 = vpop.xlane.xlu0 %1387
        %v1389 = vrsqrt.pop %v1385
        %v1390 = vmul.f32 %v1385, %v1389
        %vm1391 = vcmp.eq.f32.partialorder %v1385, inf
        %v1392 = vsel %vm1391, %v1385, %v1390
        %vm1393 = vcmp.eq.f32.partialorder %v1385, 0.0
        %v1394 = vand.u32 %v1385, 2147483648
        %v1395 = vsel %vm1393, %v1394, %v1392
        %v1396 = vrsqrt.pop %v1388
        %v1397 = vmul.f32 %v1388, %v1396
        %vm1398 = vcmp.eq.f32.partialorder %v1388, inf
        %v1399 = vsel %vm1398, %v1388, %v1397
        %vm1400 = vcmp.eq.f32.partialorder %v1388, 0.0
        %v1401 = vand.u32 %v1388, 2147483648
        %v1402 = vsel %vm1400, %v1401, %v1399
        %v1404 = vsel %vm565, %v1371, 0
        %v1407 = vsel %vm565, %v1376, 0
        %1409 = vmatprep.subr.mxu0 0.0
        %1410 = vmatpush1.msra.mxu0 %v676
        %1411 = vmatprep.subr.mxu0 0.0
        %1412 = vmatpush1.msra.mxu0 0.0
        %1413 = vmatprep.subr.mxu0 0.0
        %1414 = vmatpush1.msra.mxu0 0.0
        %1415 = vmatprep.subr.mxu0 0.0
        %1416 = vmatpush1.msra.mxu0 0.0
        %1417 = vmatprep.subr.mxu0 0.0
        %1418 = vmatpush1.msra.mxu0 0.0
        %1419 = vmatprep.subr.mxu0 0.0
        %1420 = vmatpush1.msra.mxu0 0.0
        %1421 = vmatprep.subr.mxu0 0.0
        %1422 = vmatpush1.msra.mxu0 0.0
        %1423 = vmatprep.subr.mxu0 0.0
        %1424 = vmatpush1.msra.mxu0 0.0
        %1425 = vmatprep.subr.mxu0 0.0
        %1426 = vmatpush1.msra.mxu0 0.0
        %1427 = vmatprep.subr.mxu0 0.0
        %1428 = vmatpush1.msra.mxu0 0.0
        %1429 = vmatprep.subr.mxu0 0.0
        %1430 = vmatpush1.msra.mxu0 0.0
        %1431 = vmatprep.subr.mxu0 0.0
        %1432 = vmatpush1.msra.mxu0 0.0
        %1433 = vmatprep.subr.mxu0 0.0
        %1434 = vmatpush1.msra.mxu0 0.0
        %1435 = vmatprep.subr.mxu0 0.0
        %1436 = vmatpush1.msra.mxu0 0.0
        %1437 = vmatprep.subr.mxu0 0.0
        %1438 = vmatpush1.msra.mxu0 0.0
        %1439 = vmatprep.subr.mxu0 0.0
        %1440 = vmatpush1.msra.mxu0 0.0
        %1441 = vmatprep.subr.mxu0 0.0
        %1442 = vmatpush1.msra.mxu0 0.0
        %1443 = vmatprep.subr.mxu0 0.0
        %1444 = vmatpush1.msra.mxu0 0.0
        %1445 = vmatprep.subr.mxu0 0.0
        %1446 = vmatpush1.msra.mxu0 0.0
        %1447 = vmatprep.subr.mxu0 0.0
        %1448 = vmatpush1.msra.mxu0 0.0
        %1449 = vmatprep.subr.mxu0 0.0
        %1450 = vmatpush1.msra.mxu0 0.0
        %1451 = vmatprep.subr.mxu0 0.0
        %1452 = vmatpush1.msra.mxu0 0.0
        %1453 = vmatprep.subr.mxu0 0.0
        %1454 = vmatpush1.msra.mxu0 0.0
        %1455 = vmatprep.subr.mxu0 0.0
        %1456 = vmatpush1.msra.mxu0 0.0
        %1457 = vmatprep.subr.mxu0 0.0
        %1458 = vmatpush1.msra.mxu0 0.0
        %1459 = vmatprep.subr.mxu0 0.0
        %1460 = vmatpush1.msra.mxu0 0.0
        %1461 = vmatprep.subr.mxu0 0.0
        %1462 = vmatpush1.msra.mxu0 0.0
        %1463 = vmatprep.subr.mxu0 0.0
        %1464 = vmatpush1.msra.mxu0 0.0
        %1465 = vmatprep.subr.mxu0 0.0
        %1466 = vmatpush1.msra.mxu0 0.0
        %1467 = vmatprep.subr.mxu0 0.0
        %1468 = vmatpush1.msra.mxu0 0.0
        %1469 = vmatprep.subr.mxu0 0.0
        %1470 = vmatpush1.msra.mxu0 0.0
        %1471 = vmatprep.subr.mxu0 0.0
        %1472 = vmatpush1.msra.mxu0 0.0
        %1473 = vmatprep.mubr.f32.mxu0 0.0
        %1474 = vmatmul.mubr.f32.gmra.mrb[0].mxu0 %v1404
        %v1475 = vpop.f32.mrb[0].mxu0
        %v1476 = vadd.f32 0.0, %v1475
        %v1477 = vpop.f32.mrb[0].mxu0
        %1478 = vmatprep.mubr.f32.mxu0 0.0
        %1479 = vmatmul.mubr.f32.gmra.mrb[0].mxu0 %v1407
        %v1480 = vpop.f32.mrb[0].mxu0
        %v1481 = vadd.f32 0.0, %v1480
        %v1482 = vpop.f32.mrb[0].mxu0
        %1483 = vdwg.mxu0
        %v1484 = vadd.f32 %v643, %v1476
        %v1485 = vadd.f32 %v648, %v1481
        %v1486 = vmul.f32 %v1395, %v758
        %v1487 = vmul.f32 %v1402, %v758
        %v1488 = vadd.f32 %v1484, %v1486
        %v1489 = vadd.f32 %v1485, %v1487
        %vm1490 = vcmp.gt.f32.partialorder %v1488, 0.0
        %vm1491 = vcmp.gt.f32.partialorder %v1489, 0.0
        %v1492 = vmul.f32 %v1488, 0.2
        %v1493 = vmul.f32 %v1489, 0.2
        %v1494 = vsel %vm1490, %v1488, %v1492
        %v1495 = vsel %vm1491, %v1489, %v1493
        %v1497 = vsel %vm773, %v1494, 0
        %v1500 = vsel %vm773, %v1495, 0
        %1502 = vmatprep.subr.mxu0 0.0
        %1503 = vmatpush1.msra.mxu0 %v426
        %1504 = vmatprep.subr.mxu0 0.0
        %1505 = vmatpush1.msra.mxu0 %v782
        %1506 = vmatprep.subr.mxu0 0.0
        %1507 = vmatpush1.msra.mxu0 0.0
        %1508 = vmatprep.subr.mxu0 0.0
        %1509 = vmatpush1.msra.mxu0 0.0
        %1510 = vmatprep.subr.mxu0 0.0
        %1511 = vmatpush1.msra.mxu0 0.0
        %1512 = vmatprep.subr.mxu0 0.0
        %1513 = vmatpush1.msra.mxu0 0.0
        %1514 = vmatprep.subr.mxu0 0.0
        %1515 = vmatpush1.msra.mxu0 0.0
        %1516 = vmatprep.subr.mxu0 0.0
        %1517 = vmatpush1.msra.mxu0 0.0
        %1518 = vmatprep.subr.mxu0 0.0
        %1519 = vmatpush1.msra.mxu0 0.0
        %1520 = vmatprep.subr.mxu0 0.0
        %1521 = vmatpush1.msra.mxu0 0.0
        %1522 = vmatprep.subr.mxu0 0.0
        %1523 = vmatpush1.msra.mxu0 0.0
        %1524 = vmatprep.subr.mxu0 0.0
        %1525 = vmatpush1.msra.mxu0 0.0
        %1526 = vmatprep.subr.mxu0 0.0
        %1527 = vmatpush1.msra.mxu0 0.0
        %1528 = vmatprep.subr.mxu0 0.0
        %1529 = vmatpush1.msra.mxu0 0.0
        %1530 = vmatprep.subr.mxu0 0.0
        %1531 = vmatpush1.msra.mxu0 0.0
        %1532 = vmatprep.subr.mxu0 0.0
        %1533 = vmatpush1.msra.mxu0 0.0
        %1534 = vmatprep.subr.mxu0 0.0
        %1535 = vmatpush1.msra.mxu0 0.0
        %1536 = vmatprep.subr.mxu0 0.0
        %1537 = vmatpush1.msra.mxu0 0.0
        %1538 = vmatprep.subr.mxu0 0.0
        %1539 = vmatpush1.msra.mxu0 0.0
        %1540 = vmatprep.subr.mxu0 0.0
        %1541 = vmatpush1.msra.mxu0 0.0
        %1542 = vmatprep.subr.mxu0 0.0
        %1543 = vmatpush1.msra.mxu0 0.0
        %1544 = vmatprep.subr.mxu0 0.0
        %1545 = vmatpush1.msra.mxu0 0.0
        %1546 = vmatprep.subr.mxu0 0.0
        %1547 = vmatpush1.msra.mxu0 0.0
        %1548 = vmatprep.subr.mxu0 0.0
        %1549 = vmatpush1.msra.mxu0 0.0
        %1550 = vmatprep.subr.mxu0 0.0
        %1551 = vmatpush1.msra.mxu0 0.0
        %1552 = vmatprep.subr.mxu0 0.0
        %1553 = vmatpush1.msra.mxu0 0.0
        %1554 = vmatprep.subr.mxu0 0.0
        %1555 = vmatpush1.msra.mxu0 0.0
        %1556 = vmatprep.subr.mxu0 0.0
        %1557 = vmatpush1.msra.mxu0 0.0
        %1558 = vmatprep.subr.mxu0 0.0
        %1559 = vmatpush1.msra.mxu0 0.0
        %1560 = vmatprep.subr.mxu0 0.0
        %1561 = vmatpush1.msra.mxu0 0.0
        %1562 = vmatprep.subr.mxu0 0.0
        %1563 = vmatpush1.msra.mxu0 0.0
        %1564 = vmatprep.subr.mxu0 0.0
        %1565 = vmatpush1.msra.mxu0 0.0
        %1566 = vmatprep.mubr.f32.mxu0 0.0
        %1567 = vmatmul.mubr.f32.gmra.mrb[0].mxu0 %v1497
        %v1568 = vpop.f32.mrb[0].mxu0
        %v1569 = vadd.f32 %v772, %v1568
        %v1570 = vpop.f32.mrb[0].mxu0
        %1571 = vmatprep.mubr.f32.mxu0 0.0
        %1572 = vmatmul.mubr.f32.gmra.mrb[0].mxu0 %v1500
        %v1573 = vpop.f32.mrb[0].mxu0
        %v1574 = vadd.f32 %v772, %v1573
        %v1575 = vpop.f32.mrb[0].mxu0
        %1576 = vdwg.mxu0
        %vm1577 = vcmp.gt.f32.partialorder %v1569, 0.0
        %vm1578 = vcmp.gt.f32.partialorder %v1574, 0.0
        %v1579 = vmul.f32 %v1569, 0.2
        %v1580 = vmul.f32 %v1574, 0.2
        %v1581 = vsel %vm1577, %v1569, %v1579
        %v1582 = vsel %vm1578, %v1574, %v1580
        %v1583 = vmul.f32 %v1581, %v868
        %v1584 = vmul.f32 %v1582, %v868
        %v1585 = vsel %vm773, %v1583, 0.0
        %1586 = vadd.xlane.f32.xlu0 %v1585
        %v1587 = vpop.xlane.xlu0 %1586
        %v1588 = vsel %vm773, %v1584, 0.0
        %1589 = vadd.xlane.f32.xlu0 %v1588
        %v1590 = vpop.xlane.xlu0 %1589
        %v1591 = vadd.f32 %v1587, %v880
        %v1592 = vadd.f32 %v1590, %v880
        %1594 = vset.pattern.permute.xlu0 0
        %1595 = vperm.xlu0 %1594, %v1591
        %v1596 = vpop.permute.xlu0 %1595
        %1599 = vset.pattern.permute.xlu0 0
        %1600 = vperm.xlu0 %1599, %v1592
        %v1601 = vpop.permute.xlu0 %1600
        %v1603 = vsel %vm1290, %v1596, %v1248
        %v1604 = vsel %vm1291, %v1601, %v1249
        %v1605 = vsel %vm431, %v1292, inf
        %1606 = vmin.xlane.f32.xlu0 %v1605
        %v1607 = vpop.xlane.xlu0 %1606
        %v1608 = vsel %vm431, %v1293, inf
        %1609 = vmin.xlane.f32.xlu0 %v1608
        %v1610 = vpop.xlane.xlu0 %1609
        %vm1611 = vcmp.le.f32.partialorder %v1292, %v1607
        %vm1612 = vcmp.le.f32.partialorder %v1293, %v1610
        %v1613 = vsel %vm1611, %v421, 16
        %v1614 = vsel %vm1612, %v421, 16
        %v1615 = vsel %vm431, %v1613, 2147483647
        %v1616 = vand.u32 %v1615, 65535
        %v1617 = vshra.s32 %v1615, 16
        %v1618 = vcvt.s32.f32 %v1616
        %v1619 = vcvt.s32.f32 %v1617
        %1620 = vmin.xlane.f32.xlu0 %v1619
        %v1621 = vpop.xlane.xlu0 %1620
        %vm1622 = vcmp.eq.f32.partialorder %v1619, %v1621
        %v1623 = vsel %vm1622, %v1618, inf
        %1624 = vmin.xlane.f32.xlu0 %v1623
        %v1625 = vpop.xlane.xlu0 %1624
        %v1626 = vcvt.f32.s32 %v1625
        %v1627 = vcvt.f32.s32 %v1621
        %v1628 = vshll.u32 %v1627, 16
        %v1629 = vadd.s32 %v1628, %v1626
        %v1630 = vsel %vm431, %v1614, 2147483647
        %v1631 = vand.u32 %v1630, 65535
        %v1632 = vshra.s32 %v1630, 16
        %v1633 = vcvt.s32.f32 %v1631
        %v1634 = vcvt.s32.f32 %v1632
        %1635 = vmin.xlane.f32.xlu0 %v1634
        %v1636 = vpop.xlane.xlu0 %1635
        %vm1637 = vcmp.eq.f32.partialorder %v1634, %v1636
        %v1638 = vsel %vm1637, %v1633, inf
        %1639 = vmin.xlane.f32.xlu0 %v1638
        %v1640 = vpop.xlane.xlu0 %1639
        %v1641 = vcvt.f32.s32 %v1640
        %v1642 = vcvt.f32.s32 %v1636
        %v1643 = vshll.u32 %v1642, 16
        %v1644 = vadd.s32 %v1643, %v1641
        %vm1645 = vcmp.eq.s32.totalorder %v421, %v1629
        %vm1646 = vcmp.eq.s32.totalorder %v421, %v1644
        %v1647 = vsel %vm1645, 1, 0
        %v1648 = vsel %vm1646, 1, 0
        %v1649 = vcvt.s32.f32 %v1647
        %v1650 = vcvt.s32.f32 %v1648
        %v1652 = vsel %vm431, %v1649, 0
        %v1655 = vsel %vm431, %v1650, 0
        %1657 = vmatprep.subr.mxu0 0.0
        %1658 = vmatpush1.msra.mxu0 %v330
        %1659 = vmatprep.subr.mxu0 0.0
        %1660 = vmatpush1.msra.mxu0 %v331
        %1661 = vmatprep.subr.mxu0 0.0
        %1662 = vmatpush1.msra.mxu0 0.0
        %1663 = vmatprep.subr.mxu0 0.0
        %1664 = vmatpush1.msra.mxu0 0.0
        %1665 = vmatprep.subr.mxu0 0.0
        %1666 = vmatpush1.msra.mxu0 0.0
        %1667 = vmatprep.subr.mxu0 0.0
        %1668 = vmatpush1.msra.mxu0 0.0
        %1669 = vmatprep.subr.mxu0 0.0
        %1670 = vmatpush1.msra.mxu0 0.0
        %1671 = vmatprep.subr.mxu0 0.0
        %1672 = vmatpush1.msra.mxu0 0.0
        %1673 = vmatprep.subr.mxu0 0.0
        %1674 = vmatpush1.msra.mxu0 0.0
        %1675 = vmatprep.subr.mxu0 0.0
        %1676 = vmatpush1.msra.mxu0 0.0
        %1677 = vmatprep.subr.mxu0 0.0
        %1678 = vmatpush1.msra.mxu0 0.0
        %1679 = vmatprep.subr.mxu0 0.0
        %1680 = vmatpush1.msra.mxu0 0.0
        %1681 = vmatprep.subr.mxu0 0.0
        %1682 = vmatpush1.msra.mxu0 0.0
        %1683 = vmatprep.subr.mxu0 0.0
        %1684 = vmatpush1.msra.mxu0 0.0
        %1685 = vmatprep.subr.mxu0 0.0
        %1686 = vmatpush1.msra.mxu0 0.0
        %1687 = vmatprep.subr.mxu0 0.0
        %1688 = vmatpush1.msra.mxu0 0.0
        %1689 = vmatprep.subr.mxu0 0.0
        %1690 = vmatpush1.msra.mxu0 0.0
        %1691 = vmatprep.subr.mxu0 0.0
        %1692 = vmatpush1.msra.mxu0 0.0
        %1693 = vmatprep.subr.mxu0 0.0
        %1694 = vmatpush1.msra.mxu0 0.0
        %1695 = vmatprep.subr.mxu0 0.0
        %1696 = vmatpush1.msra.mxu0 0.0
        %1697 = vmatprep.subr.mxu0 0.0
        %1698 = vmatpush1.msra.mxu0 0.0
        %1699 = vmatprep.subr.mxu0 0.0
        %1700 = vmatpush1.msra.mxu0 0.0
        %1701 = vmatprep.subr.mxu0 0.0
        %1702 = vmatpush1.msra.mxu0 0.0
        %1703 = vmatprep.subr.mxu0 0.0
        %1704 = vmatpush1.msra.mxu0 0.0
        %1705 = vmatprep.subr.mxu0 0.0
        %1706 = vmatpush1.msra.mxu0 0.0
        %1707 = vmatprep.subr.mxu0 0.0
        %1708 = vmatpush1.msra.mxu0 0.0
        %1709 = vmatprep.subr.mxu0 0.0
        %1710 = vmatpush1.msra.mxu0 0.0
        %1711 = vmatprep.subr.mxu0 0.0
        %1712 = vmatpush1.msra.mxu0 0.0
        %1713 = vmatprep.subr.mxu0 0.0
        %1714 = vmatpush1.msra.mxu0 0.0
        %1715 = vmatprep.subr.mxu0 0.0
        %1716 = vmatpush1.msra.mxu0 0.0
        %1717 = vmatprep.subr.mxu0 0.0
        %1718 = vmatpush1.msra.mxu0 0.0
        %1719 = vmatprep.subr.mxu0 0.0
        %1720 = vmatpush1.msra.mxu0 0.0
        %1721 = vmatprep.mubr.f32.mxu0 0.0
        %1722 = vmatmul.mubr.f32.gmra.mrb[0].mxu0 %v1652
        %v1723 = vpop.f32.mrb[0].mxu0
        %v1724 = vadd.f32 0.0, %v1723
        %v1725 = vpop.f32.mrb[0].mxu0
        %1726 = vmatprep.mubr.f32.mxu0 0.0
        %1727 = vmatmul.mubr.f32.gmra.mrb[0].mxu0 %v1655
        %v1728 = vpop.f32.mrb[0].mxu0
        %v1729 = vadd.f32 0.0, %v1728
        %v1730 = vpop.f32.mrb[0].mxu0
        %1731 = vdwg.mxu0
        %v1732 = vsub.f32 %v553, %v1724
        %v1733 = vsub.f32 %v558, %v1729
        %v1734 = vmul.f32 %v1732, %v1732
        %v1735 = vmul.f32 %v1733, %v1733
        %v1736 = vsel %vm565, %v1734, 0.0
        %1737 = vadd.xlane.f32.xlu0 %v1736
        %v1738 = vpop.xlane.xlu0 %1737
        %v1739 = vsel %vm565, %v1735, 0.0
        %1740 = vadd.xlane.f32.xlu0 %v1739
        %v1741 = vpop.xlane.xlu0 %1740
        %v1742 = vrsqrt.pop %v1738
        %v1743 = vmul.f32 %v1738, %v1742
        %vm1744 = vcmp.eq.f32.partialorder %v1738, inf
        %v1745 = vsel %vm1744, %v1738, %v1743
        %vm1746 = vcmp.eq.f32.partialorder %v1738, 0.0
        %v1747 = vand.u32 %v1738, 2147483648
        %v1748 = vsel %vm1746, %v1747, %v1745
        %v1749 = vrsqrt.pop %v1741
        %v1750 = vmul.f32 %v1741, %v1749
        %vm1751 = vcmp.eq.f32.partialorder %v1741, inf
        %v1752 = vsel %vm1751, %v1741, %v1750
        %vm1753 = vcmp.eq.f32.partialorder %v1741, 0.0
        %v1754 = vand.u32 %v1741, 2147483648
        %v1755 = vsel %vm1753, %v1754, %v1752
        %v1757 = vsel %vm565, %v1724, 0
        %v1760 = vsel %vm565, %v1729, 0
        %1762 = vmatprep.subr.mxu0 0.0
        %1763 = vmatpush1.msra.mxu0 %v676
        %1764 = vmatprep.subr.mxu0 0.0
        %1765 = vmatpush1.msra.mxu0 0.0
        %1766 = vmatprep.subr.mxu0 0.0
        %1767 = vmatpush1.msra.mxu0 0.0
        %1768 = vmatprep.subr.mxu0 0.0
        %1769 = vmatpush1.msra.mxu0 0.0
        %1770 = vmatprep.subr.mxu0 0.0
        %1771 = vmatpush1.msra.mxu0 0.0
        %1772 = vmatprep.subr.mxu0 0.0
        %1773 = vmatpush1.msra.mxu0 0.0
        %1774 = vmatprep.subr.mxu0 0.0
        %1775 = vmatpush1.msra.mxu0 0.0
        %1776 = vmatprep.subr.mxu0 0.0
        %1777 = vmatpush1.msra.mxu0 0.0
        %1778 = vmatprep.subr.mxu0 0.0
        %1779 = vmatpush1.msra.mxu0 0.0
        %1780 = vmatprep.subr.mxu0 0.0
        %1781 = vmatpush1.msra.mxu0 0.0
        %1782 = vmatprep.subr.mxu0 0.0
        %1783 = vmatpush1.msra.mxu0 0.0
        %1784 = vmatprep.subr.mxu0 0.0
        %1785 = vmatpush1.msra.mxu0 0.0
        %1786 = vmatprep.subr.mxu0 0.0
        %1787 = vmatpush1.msra.mxu0 0.0
        %1788 = vmatprep.subr.mxu0 0.0
        %1789 = vmatpush1.msra.mxu0 0.0
        %1790 = vmatprep.subr.mxu0 0.0
        %1791 = vmatpush1.msra.mxu0 0.0
        %1792 = vmatprep.subr.mxu0 0.0
        %1793 = vmatpush1.msra.mxu0 0.0
        %1794 = vmatprep.subr.mxu0 0.0
        %1795 = vmatpush1.msra.mxu0 0.0
        %1796 = vmatprep.subr.mxu0 0.0
        %1797 = vmatpush1.msra.mxu0 0.0
        %1798 = vmatprep.subr.mxu0 0.0
        %1799 = vmatpush1.msra.mxu0 0.0
        %1800 = vmatprep.subr.mxu0 0.0
        %1801 = vmatpush1.msra.mxu0 0.0
        %1802 = vmatprep.subr.mxu0 0.0
        %1803 = vmatpush1.msra.mxu0 0.0
        %1804 = vmatprep.subr.mxu0 0.0
        %1805 = vmatpush1.msra.mxu0 0.0
        %1806 = vmatprep.subr.mxu0 0.0
        %1807 = vmatpush1.msra.mxu0 0.0
        %1808 = vmatprep.subr.mxu0 0.0
        %1809 = vmatpush1.msra.mxu0 0.0
        %1810 = vmatprep.subr.mxu0 0.0
        %1811 = vmatpush1.msra.mxu0 0.0
        %1812 = vmatprep.subr.mxu0 0.0
        %1813 = vmatpush1.msra.mxu0 0.0
        %1814 = vmatprep.subr.mxu0 0.0
        %1815 = vmatpush1.msra.mxu0 0.0
        %1816 = vmatprep.subr.mxu0 0.0
        %1817 = vmatpush1.msra.mxu0 0.0
        %1818 = vmatprep.subr.mxu0 0.0
        %1819 = vmatpush1.msra.mxu0 0.0
        %1820 = vmatprep.subr.mxu0 0.0
        %1821 = vmatpush1.msra.mxu0 0.0
        %1822 = vmatprep.subr.mxu0 0.0
        %1823 = vmatpush1.msra.mxu0 0.0
        %1824 = vmatprep.subr.mxu0 0.0
        %1825 = vmatpush1.msra.mxu0 0.0
        %1826 = vmatprep.mubr.f32.mxu0 0.0
        %1827 = vmatmul.mubr.f32.gmra.mrb[0].mxu0 %v1757
        %v1828 = vpop.f32.mrb[0].mxu0
        %v1829 = vadd.f32 0.0, %v1828
        %v1830 = vpop.f32.mrb[0].mxu0
        %1831 = vmatprep.mubr.f32.mxu0 0.0
        %1832 = vmatmul.mubr.f32.gmra.mrb[0].mxu0 %v1760
        %v1833 = vpop.f32.mrb[0].mxu0
        %v1834 = vadd.f32 0.0, %v1833
        %v1835 = vpop.f32.mrb[0].mxu0
        %1836 = vdwg.mxu0
        %v1837 = vadd.f32 %v643, %v1829
        %v1838 = vadd.f32 %v648, %v1834
        %v1839 = vmul.f32 %v1748, %v758
        %v1840 = vmul.f32 %v1755, %v758
        %v1841 = vadd.f32 %v1837, %v1839
        %v1842 = vadd.f32 %v1838, %v1840
        %vm1843 = vcmp.gt.f32.partialorder %v1841, 0.0
        %vm1844 = vcmp.gt.f32.partialorder %v1842, 0.0
        %v1845 = vmul.f32 %v1841, 0.2
        %v1846 = vmul.f32 %v1842, 0.2
        %v1847 = vsel %vm1843, %v1841, %v1845
        %v1848 = vsel %vm1844, %v1842, %v1846
        %v1850 = vsel %vm773, %v1847, 0
        %v1853 = vsel %vm773, %v1848, 0
        %1855 = vmatprep.subr.mxu0 0.0
        %1856 = vmatpush1.msra.mxu0 %v426
        %1857 = vmatprep.subr.mxu0 0.0
        %1858 = vmatpush1.msra.mxu0 %v782
        %1859 = vmatprep.subr.mxu0 0.0
        %1860 = vmatpush1.msra.mxu0 0.0
        %1861 = vmatprep.subr.mxu0 0.0
        %1862 = vmatpush1.msra.mxu0 0.0
        %1863 = vmatprep.subr.mxu0 0.0
        %1864 = vmatpush1.msra.mxu0 0.0
        %1865 = vmatprep.subr.mxu0 0.0
        %1866 = vmatpush1.msra.mxu0 0.0
        %1867 = vmatprep.subr.mxu0 0.0
        %1868 = vmatpush1.msra.mxu0 0.0
        %1869 = vmatprep.subr.mxu0 0.0
        %1870 = vmatpush1.msra.mxu0 0.0
        %1871 = vmatprep.subr.mxu0 0.0
        %1872 = vmatpush1.msra.mxu0 0.0
        %1873 = vmatprep.subr.mxu0 0.0
        %1874 = vmatpush1.msra.mxu0 0.0
        %1875 = vmatprep.subr.mxu0 0.0
        %1876 = vmatpush1.msra.mxu0 0.0
        %1877 = vmatprep.subr.mxu0 0.0
        %1878 = vmatpush1.msra.mxu0 0.0
        %1879 = vmatprep.subr.mxu0 0.0
        %1880 = vmatpush1.msra.mxu0 0.0
        %1881 = vmatprep.subr.mxu0 0.0
        %1882 = vmatpush1.msra.mxu0 0.0
        %1883 = vmatprep.subr.mxu0 0.0
        %1884 = vmatpush1.msra.mxu0 0.0
        %1885 = vmatprep.subr.mxu0 0.0
        %1886 = vmatpush1.msra.mxu0 0.0
        %1887 = vmatprep.subr.mxu0 0.0
        %1888 = vmatpush1.msra.mxu0 0.0
        %1889 = vmatprep.subr.mxu0 0.0
        %1890 = vmatpush1.msra.mxu0 0.0
        %1891 = vmatprep.subr.mxu0 0.0
        %1892 = vmatpush1.msra.mxu0 0.0
        %1893 = vmatprep.subr.mxu0 0.0
        %1894 = vmatpush1.msra.mxu0 0.0
        %1895 = vmatprep.subr.mxu0 0.0
        %1896 = vmatpush1.msra.mxu0 0.0
        %1897 = vmatprep.subr.mxu0 0.0
        %1898 = vmatpush1.msra.mxu0 0.0
        %1899 = vmatprep.subr.mxu0 0.0
        %1900 = vmatpush1.msra.mxu0 0.0
        %1901 = vmatprep.subr.mxu0 0.0
        %1902 = vmatpush1.msra.mxu0 0.0
        %1903 = vmatprep.subr.mxu0 0.0
        %1904 = vmatpush1.msra.mxu0 0.0
        %1905 = vmatprep.subr.mxu0 0.0
        %1906 = vmatpush1.msra.mxu0 0.0
        %1907 = vmatprep.subr.mxu0 0.0
        %1908 = vmatpush1.msra.mxu0 0.0
        %1909 = vmatprep.subr.mxu0 0.0
        %1910 = vmatpush1.msra.mxu0 0.0
        %1911 = vmatprep.subr.mxu0 0.0
        %1912 = vmatpush1.msra.mxu0 0.0
        %1913 = vmatprep.subr.mxu0 0.0
        %1914 = vmatpush1.msra.mxu0 0.0
        %1915 = vmatprep.subr.mxu0 0.0
        %1916 = vmatpush1.msra.mxu0 0.0
        %1917 = vmatprep.subr.mxu0 0.0
        %1918 = vmatpush1.msra.mxu0 0.0
        %1919 = vmatprep.mubr.f32.mxu0 0.0
        %1920 = vmatmul.mubr.f32.gmra.mrb[0].mxu0 %v1850
        %v1921 = vpop.f32.mrb[0].mxu0
        %v1922 = vadd.f32 %v772, %v1921
        %v1923 = vpop.f32.mrb[0].mxu0
        %1924 = vmatprep.mubr.f32.mxu0 0.0
        %1925 = vmatmul.mubr.f32.gmra.mrb[0].mxu0 %v1853
        %v1926 = vpop.f32.mrb[0].mxu0
        %v1927 = vadd.f32 %v772, %v1926
        %v1928 = vpop.f32.mrb[0].mxu0
        %1929 = vdwg.mxu0
        %vm1930 = vcmp.gt.f32.partialorder %v1922, 0.0
        %vm1931 = vcmp.gt.f32.partialorder %v1927, 0.0
        %v1932 = vmul.f32 %v1922, 0.2
        %v1933 = vmul.f32 %v1927, 0.2
        %v1934 = vsel %vm1930, %v1922, %v1932
        %v1935 = vsel %vm1931, %v1927, %v1933
        %v1936 = vmul.f32 %v1934, %v868
        %v1937 = vmul.f32 %v1935, %v868
        %v1938 = vsel %vm773, %v1936, 0.0
        %1939 = vadd.xlane.f32.xlu0 %v1938
        %v1940 = vpop.xlane.xlu0 %1939
        %v1941 = vsel %vm773, %v1937, 0.0
        %1942 = vadd.xlane.f32.xlu0 %v1941
        %v1943 = vpop.xlane.xlu0 %1942
        %v1944 = vadd.f32 %v1940, %v880
        %v1945 = vadd.f32 %v1943, %v880
        %1947 = vset.pattern.permute.xlu0 0
        %1948 = vperm.xlu0 %1947, %v1944
        %v1949 = vpop.permute.xlu0 %1948
        %1952 = vset.pattern.permute.xlu0 0
        %1953 = vperm.xlu0 %1952, %v1945
        %v1954 = vpop.permute.xlu0 %1953
        %v1956 = vsel %vm1645, %v1949, %v1603
        %v1957 = vsel %vm1646, %v1954, %v1604
        %v1958 = vld [vmem:[%s287] sm:$0xff]
        %v1959 = vld [vmem:[%s287 + $0x8] sm:$0xff]
        %v1961 = vsel %vm431, %v1956, 0
        %v1964 = vsel %vm431, %v1957, 0
        %1966 = vmatprep.subr.mxu0 0.0
        %1967 = vmatpush1.msra.mxu0 %v1958
        %1968 = vmatprep.subr.mxu0 0.0
        %1969 = vmatpush1.msra.mxu0 %v1959
        %1970 = vmatprep.subr.mxu0 0.0
        %1971 = vmatpush1.msra.mxu0 0.0
        %1972 = vmatprep.subr.mxu0 0.0
        %1973 = vmatpush1.msra.mxu0 0.0
        %1974 = vmatprep.subr.mxu0 0.0
        %1975 = vmatpush1.msra.mxu0 0.0
        %1976 = vmatprep.subr.mxu0 0.0
        %1977 = vmatpush1.msra.mxu0 0.0
        %1978 = vmatprep.subr.mxu0 0.0
        %1979 = vmatpush1.msra.mxu0 0.0
        %1980 = vmatprep.subr.mxu0 0.0
        %1981 = vmatpush1.msra.mxu0 0.0
        %1982 = vmatprep.subr.mxu0 0.0
        %1983 = vmatpush1.msra.mxu0 0.0
        %1984 = vmatprep.subr.mxu0 0.0
        %1985 = vmatpush1.msra.mxu0 0.0
        %1986 = vmatprep.subr.mxu0 0.0
        %1987 = vmatpush1.msra.mxu0 0.0
        %1988 = vmatprep.subr.mxu0 0.0
        %1989 = vmatpush1.msra.mxu0 0.0
        %1990 = vmatprep.subr.mxu0 0.0
        %1991 = vmatpush1.msra.mxu0 0.0
        %1992 = vmatprep.subr.mxu0 0.0
        %1993 = vmatpush1.msra.mxu0 0.0
        %1994 = vmatprep.subr.mxu0 0.0
        %1995 = vmatpush1.msra.mxu0 0.0
        %1996 = vmatprep.subr.mxu0 0.0
        %1997 = vmatpush1.msra.mxu0 0.0
        %1998 = vmatprep.subr.mxu0 0.0
        %1999 = vmatpush1.msra.mxu0 0.0
        %2000 = vmatprep.subr.mxu0 0.0
        %2001 = vmatpush1.msra.mxu0 0.0
        %2002 = vmatprep.subr.mxu0 0.0
        %2003 = vmatpush1.msra.mxu0 0.0
        %2004 = vmatprep.subr.mxu0 0.0
        %2005 = vmatpush1.msra.mxu0 0.0
        %2006 = vmatprep.subr.mxu0 0.0
        %2007 = vmatpush1.msra.mxu0 0.0
        %2008 = vmatprep.subr.mxu0 0.0
        %2009 = vmatpush1.msra.mxu0 0.0
        %2010 = vmatprep.subr.mxu0 0.0
        %2011 = vmatpush1.msra.mxu0 0.0
        %2012 = vmatprep.subr.mxu0 0.0
        %2013 = vmatpush1.msra.mxu0 0.0
        %2014 = vmatprep.subr.mxu0 0.0
        %2015 = vmatpush1.msra.mxu0 0.0
        %2016 = vmatprep.subr.mxu0 0.0
        %2017 = vmatpush1.msra.mxu0 0.0
        %2018 = vmatprep.subr.mxu0 0.0
        %2019 = vmatpush1.msra.mxu0 0.0
        %2020 = vmatprep.subr.mxu0 0.0
        %2021 = vmatpush1.msra.mxu0 0.0
        %2022 = vmatprep.subr.mxu0 0.0
        %2023 = vmatpush1.msra.mxu0 0.0
        %2024 = vmatprep.subr.mxu0 0.0
        %2025 = vmatpush1.msra.mxu0 0.0
        %2026 = vmatprep.subr.mxu0 0.0
        %2027 = vmatpush1.msra.mxu0 0.0
        %2028 = vmatprep.subr.mxu0 0.0
        %2029 = vmatpush1.msra.mxu0 0.0
        %2030 = vmatprep.mubr.f32.mxu0 0.0
        %2031 = vmatmul.mubr.f32.gmra.mrb[0].mxu0 %v1961
        %v2032 = vpop.f32.mrb[0].mxu0
        %v2033 = vadd.f32 0.0, %v2032
        %v2034 = vpop.f32.mrb[0].mxu0
        %2035 = vmatprep.mubr.f32.mxu0 0.0
        %2036 = vmatmul.mubr.f32.gmra.mrb[0].mxu0 %v1964
        %v2037 = vpop.f32.mrb[0].mxu0
        %v2038 = vadd.f32 0.0, %v2037
        %v2039 = vpop.f32.mrb[0].mxu0
        %2040 = vdwg.mxu0
        %2041 = vst [vmem:[%s325] sm:$0xff] %v2033
        %2042 = vst [vmem:[%s325 + $0x8] sm:$0xff] %v2038
        %s2043 = sand.u32 %s148, 1
        %s2044 = scalar_lea.sflag [#allocation4], %s2043
        %s2045 = sand.u32 %s148, 1
        %s2046 = smul.addr %s2045, 16
        %s2047 = scalar_lea.vmem [#allocation10], %s2046
        // Predicated region
        $region53: #{tpu_custom_call.1} parent=35 // pred_check
          %p2048 = pneg %p158
        $region54: #{tpu_custom_call.1} parent=35 // pred_check_branch
          %2050 = sbr.rel (%p2048) target = $region56
        $region55: #{tpu_custom_call.1} parent=35 // pred_region
          %s2051 = smul.u32 2, %s30
          %s2053 = ssub.s32 256, 256
          %2054 = vsyncadd %s2044, %s2053
          %s2055 = smul.addr %s29, 2
          %s2056 = sadd.s32 %s2051, %s2055
          %s2057 = smul.addr %s2056, 128
          %s2058 = scalar_lea.hbm %s4, %s2057
          %s2059 = sshll.u32 %s2047, 4
          %s2060 = int_to_ptr.vmem [resolvable:$true] %s2059
          %2065 = dma.vmem_to_hbm [thread:$0]  %s2060, 256, %s2058, %s2044, 128, 128, 8
        $region56: #{tpu_custom_call.1} parent=35 // pred_fallthru
          _
      $region36: #{tpu_custom_call.1} parent=5 // pred_fallthru
        _
      %p2066 = scmp.le.s32.totalorder 2, %s20
      // Predicated region
      $region57: #{tpu_custom_call.1} parent=5 // pred_check
        %p2067 = pneg %p2066
      $region58: #{tpu_custom_call.1} parent=5 // pred_check_branch
        %2069 = sbr.rel (%p2067) target = $region60
      $region59: #{tpu_custom_call.1} parent=5 // pred_region
        %s2070 = ssub.s32 %s20, 2
        // Predicated region
        $region61: #{tpu_custom_call.1} parent=59 // pred_check
          %p2071 = pneg %p164
        $region62: #{tpu_custom_call.1} parent=59 // pred_check_branch
          %2073 = sbr.rel (%p2071) target = $region64
        $region63: #{tpu_custom_call.1} parent=59 // pred_region
          %s2074 = sand.u32 %s149, 1
          %s2075 = scalar_lea.sflag [#allocation4], %s2074
          %s2076 = sand.u32 %s149, 1
          %s2077 = smul.addr %s2076, 16
          %s2078 = scalar_lea.vmem [#allocation10], %s2077
          %2079 = dma.done %s2075, 256
        $region64: #{tpu_custom_call.1} parent=59 // pred_fallthru
          _
      $region60: #{tpu_custom_call.1} parent=5 // pred_fallthru
        _
    $region6: #{tpu_custom_call.1} parent=1 // loop_footer
      %s24 = sadd.s32 1, %s20
    $region7: #{tpu_custom_call.1} parent=1 // loop_footer_branch
      %19 = sbr.rel target = $region3
    $region8: #{tpu_custom_call.1} parent=1 // loop_exit
      _
    %2080 = vsyncpa [#allocation3], 1
    %s2081 = scalar_lea.sflag [#allocation3], 1
    %2082 = vsyncpa %s2081, 1
    %2083 = vsyncpa [#allocation6], 1
    %s2084 = scalar_lea.sflag [#allocation6], 1
    %2085 = vsyncpa %s2084, 1
    %2086 = vsyncpa [#allocation9], 1
    %2087 = vsyncpa [#allocation4], 1
    %s2088 = scalar_lea.sflag [#allocation4], 1
    %2089 = vsyncpa %s2088, 1

</llo_original>
